<compile_context>
chip_gen: v7x
topology: tpu7x:2x2x1
jax: 0.10.0
libtpu: 0.0.40
codegen_flags: <defaults>
</compile_context>

<pallas_src>
import math

import jax
import jax.numpy as jnp
from jax.experimental import pallas as pl
from jax.experimental.pallas import tpu as pltpu


# ---------------------------------------------------------------------------
# helpers
# ---------------------------------------------------------------------------
def _round_up(x, m):
    return (x + m - 1) // m * m


def _pick_time_chunk(seq, max_chunk=32):
    """Largest divisor of seq that is <= max_chunk (timesteps per grid step)."""
    for c in range(min(seq, max_chunk), 0, -1):
        if seq % c == 0:
            return c
    return 1


def _pick_batch_block(pbs):
    """Largest multiple of 8 that divides pbs and is <= 128.
    (For v7x with modest batches, pbs // 2 engages both TensorCores.)"""
    best = 8
    for c in range(8, min(pbs, 128) + 1, 8):
        if pbs % c == 0:
            best = c
    return best


def _pad_gate_params(W, U, b, HS, HP):
    """Pad each of the 4 gate blocks (i, f, g, o) from HS to HP columns so gate
    slices / hidden state are lane-aligned.  Padded units stay exactly zero:
    c_pad = sigmoid(0)*0 + sigmoid(0)*tanh(0) = 0, h_pad = sigmoid(0)*tanh(0) = 0."""
    def pad_cols(M):
        r = M.shape[0]
        return jnp.pad(M.reshape(r, 4, HS),
                       ((0, 0), (0, 0), (0, HP - HS))).reshape(r, 4 * HP)

    Wp = pad_cols(W)                                    # (in_dim, 4*HP)
    Up = jnp.pad(pad_cols(U), ((0, HP - HS), (0, 0)))   # (HP, 4*HP)
    bp = jnp.pad(b.reshape(4, HS), ((0, 0), (0, HP - HS))).reshape(4 * HP)
    return Wp, Up, bp


# ---------------------------------------------------------------------------
# recurrent Pallas kernel
# ---------------------------------------------------------------------------
def _lstm_recurrent_kernel(xw_ref, u_ref, hseq_ref, hlast_ref, clast_ref,
                           h_sc, c_sc):
    t_chunk = pl.program_id(1)

    @pl.when(t_chunk == 0)
    def _():
        h_sc[...] = jnp.zeros_like(h_sc)
        c_sc[...] = jnp.zeros_like(c_sc)

    HP = h_sc.shape[-1]
    n_steps = xw_ref.shape[0]              # timesteps in this chunk (static)
    u = u_ref[...]                         # resident recurrent weights

    def step(i, carry):
        # gates = (x_t @ W + b) [hoisted, precomputed] + h_{t-1} @ U
        gates = xw_ref[i] + jnp.dot(h_sc[...], u,
                                    preferred_element_type=jnp.float32)
        i_t = jax.nn.sigmoid(gates[:, 0 * HP:1 * HP])
        f_t = jax.nn.sigmoid(gates[:, 1 * HP:2 * HP])
        g_t = jnp.tanh(gates[:, 2 * HP:3 * HP])
        o_t = jax.nn.sigmoid(gates[:, 3 * HP:4 * HP])
        c_new = f_t * c_sc[...] + i_t * g_t
        h_new = o_t * jnp.tanh(c_new)
        c_sc[...] = c_new
        h_sc[...] = h_new
        hseq_ref[i] = h_new
        return carry

    jax.lax.fori_loop(0, n_steps, step, 0, unroll=True)

    # Write final states only once, on the last time chunk.
    @pl.when(t_chunk == pl.num_programs(1) - 1)
    def _():
        hlast_ref[...] = h_sc[...]
        clast_ref[...] = c_sc[...]


def _lstm_recurrence(xw_tm, U, HP, BB, TC):
    """xw_tm: (seq, pbs, 4*HP) precomputed input projection (+bias), time-major.
    U: (HP, 4*HP) recurrent weights.  Returns (hseq_tm, h_T, c_T)."""
    seq, pbs, _ = xw_tm.shape
    n_b, n_t = pbs // BB, seq // TC

    grid_spec = pltpu.PrefetchScalarGridSpec(
        num_scalar_prefetch=0,
        grid=(n_b, n_t),
        in_specs=[
            pl.BlockSpec((TC, BB, 4 * HP), lambda b, t: (t, b, 0)),  # x@W + b
            pl.BlockSpec((HP, 4 * HP), lambda b, t: (0, 0)),         # U (resident)
        ],
        out_specs=[
            pl.BlockSpec((TC, BB, HP), lambda b, t: (t, b, 0)),      # hidden seq
            pl.BlockSpec((BB, HP), lambda b, t: (b, 0)),             # h_T
            pl.BlockSpec((BB, HP), lambda b, t: (b, 0)),             # c_T
        ],
        scratch_shapes=[
            pltpu.VMEM((BB, HP), jnp.float32),   # h carry
            pltpu.VMEM((BB, HP), jnp.float32),   # c carry
        ],
    )

    out_shapes = (
        jax.ShapeDtypeStruct((seq, pbs, HP), jnp.float32),
        jax.ShapeDtypeStruct((pbs, HP), jnp.float32),
        jax.ShapeDtypeStruct((pbs, HP), jnp.float32),
    )

    flops = 2 * seq * pbs * HP * 4 * HP + 12 * seq * pbs * HP
    transcendentals = 5 * seq * pbs * HP
    bytes_accessed = 4 * (seq * pbs * 4 * HP + seq * pbs * HP
                          + HP * 4 * HP + 2 * pbs * HP)

    # rough double-buffered VMEM footprint, with headroom
    vmem_est = 4 * (2 * TC * BB * 4 * HP + 2 * TC * BB * HP
                    + 2 * HP * 4 * HP + 2 * 2 * BB * HP + 2 * BB * HP)
    vmem_limit = int(min(64 * 2 ** 20, max(32 * 2 ** 20, 2 * vmem_est)))

    return pl.pallas_call(
        _lstm_recurrent_kernel,
        out_shape=out_shapes,
        grid_spec=grid_spec,
        compiler_params=pltpu.CompilerParams(
            dimension_semantics=("parallel", "arbitrary"),
            vmem_limit_bytes=vmem_limit,
        ),
        cost_estimate=pl.CostEstimate(
            flops=int(flops),
            transcendentals=int(transcendentals),
            bytes_accessed=int(bytes_accessed),
        ),
    )(xw_tm, U)


# ---------------------------------------------------------------------------
# full module forward
# ---------------------------------------------------------------------------
def lstm_model_forward(x, layer_params, fc_w, fc_b, *, time_chunk_max=32):
    """x: (batch, 1, seq, input_size); layer_params: list of (W, U, b) with
    W = weight_ih^T (in, 4H), U = weight_hh^T (H, 4H), b = b_ih + b_hh (4H,);
    fc_w: (num_classes, H), fc_b: (num_classes,).  Returns (batch, num_classes)."""
    x = jnp.squeeze(x, axis=1)                 # == x.squeeze(1)
    bs, seq, _ = x.shape

    HS = layer_params[0][1].shape[0]
    HP = _round_up(HS, 128)                    # lane-aligned hidden / gate blocks
    pbs = _round_up(bs, 8)                     # full-sublane batch
    BB = _pick_batch_block(pbs)
    TC = _pick_time_chunk(seq, time_chunk_max)

    inp_tm = None                              # time-major (seq, pbs, feat) input
    h_T = None
    for li, (W, U, b) in enumerate(layer_params):
        Wp, Up, bp = _pad_gate_params(W, U, b, HS, HP)

        if li == 0:
            # Hoisted input projection; transpose folded into the einsum output
            # layout (no separate full HBM pass for the x transpose).
            xw_tm = jnp.einsum('bti,ig->tbg', x, Wp,
                               preferred_element_type=jnp.float32) + bp
            if pbs != bs:
                xw_tm = jnp.pad(xw_tm, ((0, 0), (0, pbs - bs), (0, 0)))
        else:
            # Previous layer's output is HP-wide (zero-padded) -> pad W rows.
            Wp = jnp.pad(Wp, ((0, HP - W.shape[0]), (0, 0)))
            xw_tm = jnp.einsum('tbi,ig->tbg', inp_tm, Wp,
                               preferred_element_type=jnp.float32) + bp

        hseq_tm, h_T, _ = _lstm_recurrence(xw_tm, Up, HP, BB, TC)
        inp_tm = hseq_tm                      # stays time-major between layers

    # fc on the last timestep of the top layer (== h_T); drop padding.
    h_last = h_T[:bs, :HS]
    return h_last @ fc_w.T + fc_b


# ---------------------------------------------------------------------------
# pure-JAX reference (mirrors the PyTorch forward)
# ---------------------------------------------------------------------------
def _reference_model(x, layer_params, fc_w, fc_b):
    x = jnp.squeeze(x, axis=1)
    bs = x.shape[0]
    inp = x
    h_T = None
    for (W, U, b) in layer_params:
        HS = U.shape[0]

        def step(carry, x_t, W=W, U=U, b=b, HS=HS):
            h, c = carry
            gates = x_t @ W + h @ U + b
            i = jax.nn.sigmoid(gates[:, :HS])
            f = jax.nn.sigmoid(gates[:, HS:2 * HS])
            g = jnp.tanh(gates[:, 2 * HS:3 * HS])
            o = jax.nn.sigmoid(gates[:, 3 * HS:])
            c = f * c + i * g
            h = o * jnp.tanh(c)
            return (h, c), h

        h0 = jnp.zeros((bs, HS), jnp.float32)
        c0 = jnp.zeros((bs, HS), jnp.float32)
        (h_T, _), hseq = jax.lax.scan(step, (h0, c0), jnp.transpose(inp, (1, 0, 2)))
        inp = jnp.transpose(hseq, (1, 0, 2))
    return h_T @ fc_w.T + fc_b


if __name__ == "__main__":
    batch, seq, input_size, hidden_size = 2, 8, 4, 32
    num_layers, num_classes = 2, 1
    stdv = 1.0 / math.sqrt(hidden_size)

    key = jax.random.PRNGKey(0)
    k_x, k_fc_w, k_fc_b, *k_layers = jax.random.split(key, 3 + 4 * num_layers)

    x = jax.random.normal(k_x, (batch, 1, seq, input_size), dtype=jnp.float32)

    layer_params = []
    in_dim = input_size
    for l in range(num_layers):
        kw, ku, kbi, kbh = k_layers[4 * l:4 * l + 4]
        W = jax.random.uniform(kw, (in_dim, 4 * hidden_size), jnp.float32, -stdv, stdv)
        U = jax.random.uniform(ku, (hidden_size, 4 * hidden_size), jnp.float32, -stdv, stdv)
        b = (jax.random.uniform(kbi, (4 * hidden_size,), jnp.float32, -stdv, stdv)
             + jax.random.uniform(kbh, (4 * hidden_size,), jnp.float32, -stdv, stdv))
        layer_params.append((W, U, b))
        in_dim = hidden_size

    fc_w = jax.random.uniform(k_fc_w, (num_classes, hidden_size), jnp.float32, -stdv, stdv)
    fc_b = jax.random.uniform(k_fc_b, (num_classes,), jnp.float32, -stdv, stdv)

    out = lstm_model_forward(x, layer_params, fc_w, fc_b)
    jax.block_until_ready(out)

    ref = _reference_model(x, layer_params, fc_w, fc_b)
    assert out.shape == (batch, num_classes)
    assert jnp.allclose(out, ref, atol=1e-5), (out, ref)

    print("KERNEL_OK")
</pallas_src>

<mosaic_0001>
module attributes {stable_mosaic.version = 11 : i64} {
  func.func @_lstm_recurrent_kernel(%arg0: i32, %arg1: i32, %arg2: memref<8x8x512xf32, #tpu.memory_space<vmem>>, %arg3: memref<128x512xf32, #tpu.memory_space<vmem>>, %arg4: memref<8x8x128xf32, #tpu.memory_space<vmem>>, %arg5: memref<8x128xf32, #tpu.memory_space<vmem>>, %arg6: memref<8x128xf32, #tpu.memory_space<vmem>>, %arg7: memref<8x128xf32, #tpu.memory_space<vmem>>, %arg8: memref<8x128xf32, #tpu.memory_space<vmem>>) attributes {dimension_semantics = [#tpu.dimension_semantics<parallel>, #tpu.dimension_semantics<arbitrary>], iteration_bounds = array<i64: 1, 1>, scalar_prefetch = 0 : i64, scratch_operands = 2 : i64, tpu.core_type = #tpu.core_type<tc>, window_params = [{transform_indices = @transform_0, window_bounds = array<i64: 8, 8, 512>}, {pipeline_mode = #tpu.pipeline_mode<synchronous>, transform_indices = @transform_1, window_bounds = array<i64: 128, 512>}, {transform_indices = @transform_2, window_bounds = array<i64: 8, 8, 128>}, {transform_indices = @transform_3, window_bounds = array<i64: 8, 128>}, {transform_indices = @transform_4, window_bounds = array<i64: 8, 128>}]} {
    %c0_i32 = arith.constant 0 : i32
    %0 = arith.cmpi eq, %arg1, %c0_i32 : i32
    %1 = arith.extui %0 : i1 to i32
    %c0_i32_0 = arith.constant 0 : i32
    %2 = arith.cmpi ne, %1, %c0_i32_0 : i32
    scf.if %2 {
      %cst_132 = arith.constant 0.000000e+00 : f32
      %311 = vector.broadcast %cst_132 : f32 to vector<8x128xf32>
      %c0_133 = arith.constant 0 : index
      %c0_134 = arith.constant 0 : index
      %312 = vector.load %arg7[%c0_133, %c0_134] : memref<8x128xf32, #tpu.memory_space<vmem>>, vector<8x128xf32>
      tpu.vector_store %arg7[%c0_133, %c0_134], %311 {strides = array<i32>} : memref<8x128xf32, #tpu.memory_space<vmem>>, vector<8x128xf32>,
      %cst_135 = arith.constant 0.000000e+00 : f32
      %313 = vector.broadcast %cst_135 : f32 to vector<8x128xf32>
      %c0_136 = arith.constant 0 : index
      %c0_137 = arith.constant 0 : index
      %314 = vector.load %arg8[%c0_136, %c0_137] : memref<8x128xf32, #tpu.memory_space<vmem>>, vector<8x128xf32>
      tpu.vector_store %arg8[%c0_136, %c0_137], %313 {strides = array<i32>} : memref<8x128xf32, #tpu.memory_space<vmem>>, vector<8x128xf32>,
    } else {
    }
    %c0 = arith.constant 0 : index
    %c0_1 = arith.constant 0 : index
    %3 = vector.load %arg3[%c0, %c0_1] : memref<128x512xf32, #tpu.memory_space<vmem>>, vector<128x512xf32>
    %c0_i32_2 = arith.constant 0 : i32
    %4 = arith.index_cast %c0_i32_2 : i32 to index
    %c0_3 = arith.constant 0 : index
    %c0_4 = arith.constant 0 : index
    %5 = vector.load %arg2[%4, %c0_3, %c0_4] : memref<8x8x512xf32, #tpu.memory_space<vmem>>, vector<1x8x512xf32>
    %6 = vector.shape_cast %5 : vector<1x8x512xf32> to vector<8x512xf32>
    %c0_5 = arith.constant 0 : index
    %c0_6 = arith.constant 0 : index
    %7 = vector.load %arg7[%c0_5, %c0_6] : memref<8x128xf32, #tpu.memory_space<vmem>>, vector<8x128xf32>
    %cst = arith.constant dense<0.000000e+00> : vector<8x512xf32>
    %8 = tpu.matmul %7, %3, %cst {dimension_numbers = #tpu.dot_dimension_numbers<[1], [0], [0], [1], [0, 0, 1, 1], [], []>} : vector<8x128xf32>, vector<128x512xf32>, vector<8x512xf32> -> vector<8x512xf32>
    %9 = arith.addf %6, %8 : vector<8x512xf32>
    %10 = vector.extract_strided_slice %9 {offsets = [0, 0], sizes = [8, 128], strides = [1, 1]} : vector<8x512xf32> to vector<8x128xf32>
    %11 = arith.negf %10 : vector<8x128xf32>
    %12 = math.exp %11 : vector<8x128xf32>
    %cst_7 = arith.constant 1.000000e+00 : f32
    %13 = vector.broadcast %cst_7 : f32 to vector<8x128xf32>
    %14 = arith.addf %13, %12 : vector<8x128xf32>
    %15 = arith.divf %13, %14 : vector<8x128xf32>
    %16 = vector.extract_strided_slice %9 {offsets = [0, 128], sizes = [8, 128], strides = [1, 1]} : vector<8x512xf32> to vector<8x128xf32>
    %17 = arith.negf %16 : vector<8x128xf32>
    %18 = math.exp %17 : vector<8x128xf32>
    %cst_8 = arith.constant 1.000000e+00 : f32
    %19 = vector.broadcast %cst_8 : f32 to vector<8x128xf32>
    %20 = arith.addf %19, %18 : vector<8x128xf32>
    %21 = arith.divf %19, %20 : vector<8x128xf32>
    %22 = vector.extract_strided_slice %9 {offsets = [0, 256], sizes = [8, 128], strides = [1, 1]} : vector<8x512xf32> to vector<8x128xf32>
    %23 = math.tanh %22 : vector<8x128xf32>
    %24 = vector.extract_strided_slice %9 {offsets = [0, 384], sizes = [8, 128], strides = [1, 1]} : vector<8x512xf32> to vector<8x128xf32>
    %25 = arith.negf %24 : vector<8x128xf32>
    %26 = math.exp %25 : vector<8x128xf32>
    %cst_9 = arith.constant 1.000000e+00 : f32
    %27 = vector.broadcast %cst_9 : f32 to vector<8x128xf32>
    %28 = arith.addf %27, %26 : vector<8x128xf32>
    %29 = arith.divf %27, %28 : vector<8x128xf32>
    %c0_10 = arith.constant 0 : index
    %c0_11 = arith.constant 0 : index
    %30 = vector.load %arg8[%c0_10, %c0_11] : memref<8x128xf32, #tpu.memory_space<vmem>>, vector<8x128xf32>
    %31 = arith.mulf %21, %30 : vector<8x128xf32>
    %32 = arith.mulf %15, %23 : vector<8x128xf32>
    %33 = arith.addf %31, %32 : vector<8x128xf32>
    %34 = math.tanh %33 : vector<8x128xf32>
    %35 = arith.mulf %29, %34 : vector<8x128xf32>
    %c0_12 = arith.constant 0 : index
    %c0_13 = arith.constant 0 : index
    %36 = vector.load %arg8[%c0_12, %c0_13] : memref<8x128xf32, #tpu.memory_space<vmem>>, vector<8x128xf32>
    tpu.vector_store %arg8[%c0_12, %c0_13], %33 {strides = array<i32>} : memref<8x128xf32, #tpu.memory_space<vmem>>, vector<8x128xf32>,
    %c0_14 = arith.constant 0 : index
    %c0_15 = arith.constant 0 : index
    %37 = vector.load %arg7[%c0_14, %c0_15] : memref<8x128xf32, #tpu.memory_space<vmem>>, vector<8x128xf32>
    tpu.vector_store %arg7[%c0_14, %c0_15], %35 {strides = array<i32>} : memref<8x128xf32, #tpu.memory_space<vmem>>, vector<8x128xf32>,
    %38 = arith.index_cast %c0_i32_2 : i32 to index
    %c0_16 = arith.constant 0 : index
    %c0_17 = arith.constant 0 : index
    %39 = vector.load %arg4[%38, %c0_16, %c0_17] : memref<8x8x128xf32, #tpu.memory_space<vmem>>, vector<1x8x128xf32>
    %40 = vector.shape_cast %39 : vector<1x8x128xf32> to vector<8x128xf32>
    %41 = vector.shape_cast %35 : vector<8x128xf32> to vector<1x8x128xf32>
    tpu.vector_store %arg4[%38, %c0_16, %c0_17], %41 {strides = array<i32>} : memref<8x8x128xf32, #tpu.memory_space<vmem>>, vector<1x8x128xf32>,
    %c1_i32 = arith.constant 1 : i32
    %42 = arith.index_cast %c1_i32 : i32 to index
    %c0_18 = arith.constant 0 : index
    %c0_19 = arith.constant 0 : index
    %43 = vector.load %arg2[%42, %c0_18, %c0_19] : memref<8x8x512xf32, #tpu.memory_space<vmem>>, vector<1x8x512xf32>
    %44 = vector.shape_cast %43 : vector<1x8x512xf32> to vector<8x512xf32>
    %c0_20 = arith.constant 0 : index
    %c0_21 = arith.constant 0 : index
    %45 = vector.load %arg7[%c0_20, %c0_21] : memref<8x128xf32, #tpu.memory_space<vmem>>, vector<8x128xf32>
    %cst_22 = arith.constant dense<0.000000e+00> : vector<8x512xf32>
    %46 = tpu.matmul %45, %3, %cst_22 {dimension_numbers = #tpu.dot_dimension_numbers<[1], [0], [0], [1], [0, 0, 1, 1], [], []>} : vector<8x128xf32>, vector<128x512xf32>, vector<8x512xf32> -> vector<8x512xf32>
    %47 = arith.addf %44, %46 : vector<8x512xf32>
    %48 = vector.extract_strided_slice %47 {offsets = [0, 0], sizes = [8, 128], strides = [1, 1]} : vector<8x512xf32> to vector<8x128xf32>
    %49 = arith.negf %48 : vector<8x128xf32>
    %50 = math.exp %49 : vector<8x128xf32>
    %cst_23 = arith.constant 1.000000e+00 : f32
    %51 = vector.broadcast %cst_23 : f32 to vector<8x128xf32>
    %52 = arith.addf %51, %50 : vector<8x128xf32>
    %53 = arith.divf %51, %52 : vector<8x128xf32>
    %54 = vector.extract_strided_slice %47 {offsets = [0, 128], sizes = [8, 128], strides = [1, 1]} : vector<8x512xf32> to vector<8x128xf32>
    %55 = arith.negf %54 : vector<8x128xf32>
    %56 = math.exp %55 : vector<8x128xf32>
    %cst_24 = arith.constant 1.000000e+00 : f32
    %57 = vector.broadcast %cst_24 : f32 to vector<8x128xf32>
    %58 = arith.addf %57, %56 : vector<8x128xf32>
    %59 = arith.divf %57, %58 : vector<8x128xf32>
    %60 = vector.extract_strided_slice %47 {offsets = [0, 256], sizes = [8, 128], strides = [1, 1]} : vector<8x512xf32> to vector<8x128xf32>
    %61 = math.tanh %60 : vector<8x128xf32>
    %62 = vector.extract_strided_slice %47 {offsets = [0, 384], sizes = [8, 128], strides = [1, 1]} : vector<8x512xf32> to vector<8x128xf32>
    %63 = arith.negf %62 : vector<8x128xf32>
    %64 = math.exp %63 : vector<8x128xf32>
    %cst_25 = arith.constant 1.000000e+00 : f32
    %65 = vector.broadcast %cst_25 : f32 to vector<8x128xf32>
    %66 = arith.addf %65, %64 : vector<8x128xf32>
    %67 = arith.divf %65, %66 : vector<8x128xf32>
    %c0_26 = arith.constant 0 : index
    %c0_27 = arith.constant 0 : index
    %68 = vector.load %arg8[%c0_26, %c0_27] : memref<8x128xf32, #tpu.memory_space<vmem>>, vector<8x128xf32>
    %69 = arith.mulf %59, %68 : vector<8x128xf32>
    %70 = arith.mulf %53, %61 : vector<8x128xf32>
    %71 = arith.addf %69, %70 : vector<8x128xf32>
    %72 = math.tanh %71 : vector<8x128xf32>
    %73 = arith.mulf %67, %72 : vector<8x128xf32>
    %c0_28 = arith.constant 0 : index
    %c0_29 = arith.constant 0 : index
    %74 = vector.load %arg8[%c0_28, %c0_29] : memref<8x128xf32, #tpu.memory_space<vmem>>, vector<8x128xf32>
    tpu.vector_store %arg8[%c0_28, %c0_29], %71 {strides = array<i32>} : memref<8x128xf32, #tpu.memory_space<vmem>>, vector<8x128xf32>,
    %c0_30 = arith.constant 0 : index
    %c0_31 = arith.constant 0 : index
    %75 = vector.load %arg7[%c0_30, %c0_31] : memref<8x128xf32, #tpu.memory_space<vmem>>, vector<8x128xf32>
    tpu.vector_store %arg7[%c0_30, %c0_31], %73 {strides = array<i32>} : memref<8x128xf32, #tpu.memory_space<vmem>>, vector<8x128xf32>,
    %76 = arith.index_cast %c1_i32 : i32 to index
    %c0_32 = arith.constant 0 : index
    %c0_33 = arith.constant 0 : index
    %77 = vector.load %arg4[%76, %c0_32, %c0_33] : memref<8x8x128xf32, #tpu.memory_space<vmem>>, vector<1x8x128xf32>
    %78 = vector.shape_cast %77 : vector<1x8x128xf32> to vector<8x128xf32>
    %79 = vector.shape_cast %73 : vector<8x128xf32> to vector<1x8x128xf32>
    tpu.vector_store %arg4[%76, %c0_32, %c0_33], %79 {strides = array<i32>} : memref<8x8x128xf32, #tpu.memory_space<vmem>>, vector<1x8x128xf32>,
    %c2_i32 = arith.constant 2 : i32
    %80 = arith.index_cast %c2_i32 : i32 to index
    %c0_34 = arith.constant 0 : index
    %c0_35 = arith.constant 0 : index
    %81 = vector.load %arg2[%80, %c0_34, %c0_35] : memref<8x8x512xf32, #tpu.memory_space<vmem>>, vector<1x8x512xf32>
    %82 = vector.shape_cast %81 : vector<1x8x512xf32> to vector<8x512xf32>
    %c0_36 = arith.constant 0 : index
    %c0_37 = arith.constant 0 : index
    %83 = vector.load %arg7[%c0_36, %c0_37] : memref<8x128xf32, #tpu.memory_space<vmem>>, vector<8x128xf32>
    %cst_38 = arith.constant dense<0.000000e+00> : vector<8x512xf32>
    %84 = tpu.matmul %83, %3, %cst_38 {dimension_numbers = #tpu.dot_dimension_numbers<[1], [0], [0], [1], [0, 0, 1, 1], [], []>} : vector<8x128xf32>, vector<128x512xf32>, vector<8x512xf32> -> vector<8x512xf32>
    %85 = arith.addf %82, %84 : vector<8x512xf32>
    %86 = vector.extract_strided_slice %85 {offsets = [0, 0], sizes = [8, 128], strides = [1, 1]} : vector<8x512xf32> to vector<8x128xf32>
    %87 = arith.negf %86 : vector<8x128xf32>
    %88 = math.exp %87 : vector<8x128xf32>
    %cst_39 = arith.constant 1.000000e+00 : f32
    %89 = vector.broadcast %cst_39 : f32 to vector<8x128xf32>
    %90 = arith.addf %89, %88 : vector<8x128xf32>
    %91 = arith.divf %89, %90 : vector<8x128xf32>
    %92 = vector.extract_strided_slice %85 {offsets = [0, 128], sizes = [8, 128], strides = [1, 1]} : vector<8x512xf32> to vector<8x128xf32>
    %93 = arith.negf %92 : vector<8x128xf32>
    %94 = math.exp %93 : vector<8x128xf32>
    %cst_40 = arith.constant 1.000000e+00 : f32
    %95 = vector.broadcast %cst_40 : f32 to vector<8x128xf32>
    %96 = arith.addf %95, %94 : vector<8x128xf32>
    %97 = arith.divf %95, %96 : vector<8x128xf32>
    %98 = vector.extract_strided_slice %85 {offsets = [0, 256], sizes = [8, 128], strides = [1, 1]} : vector<8x512xf32> to vector<8x128xf32>
    %99 = math.tanh %98 : vector<8x128xf32>
    %100 = vector.extract_strided_slice %85 {offsets = [0, 384], sizes = [8, 128], strides = [1, 1]} : vector<8x512xf32> to vector<8x128xf32>
    %101 = arith.negf %100 : vector<8x128xf32>
    %102 = math.exp %101 : vector<8x128xf32>
    %cst_41 = arith.constant 1.000000e+00 : f32
    %103 = vector.broadcast %cst_41 : f32 to vector<8x128xf32>
    %104 = arith.addf %103, %102 : vector<8x128xf32>
    %105 = arith.divf %103, %104 : vector<8x128xf32>
    %c0_42 = arith.constant 0 : index
    %c0_43 = arith.constant 0 : index
    %106 = vector.load %arg8[%c0_42, %c0_43] : memref<8x128xf32, #tpu.memory_space<vmem>>, vector<8x128xf32>
    %107 = arith.mulf %97, %106 : vector<8x128xf32>
    %108 = arith.mulf %91, %99 : vector<8x128xf32>
    %109 = arith.addf %107, %108 : vector<8x128xf32>
    %110 = math.tanh %109 : vector<8x128xf32>
    %111 = arith.mulf %105, %110 : vector<8x128xf32>
    %c0_44 = arith.constant 0 : index
    %c0_45 = arith.constant 0 : index
    %112 = vector.load %arg8[%c0_44, %c0_45] : memref<8x128xf32, #tpu.memory_space<vmem>>, vector<8x128xf32>
    tpu.vector_store %arg8[%c0_44, %c0_45], %109 {strides = array<i32>} : memref<8x128xf32, #tpu.memory_space<vmem>>, vector<8x128xf32>,
    %c0_46 = arith.constant 0 : index
    %c0_47 = arith.constant 0 : index
    %113 = vector.load %arg7[%c0_46, %c0_47] : memref<8x128xf32, #tpu.memory_space<vmem>>, vector<8x128xf32>
    tpu.vector_store %arg7[%c0_46, %c0_47], %111 {strides = array<i32>} : memref<8x128xf32, #tpu.memory_space<vmem>>, vector<8x128xf32>,
    %114 = arith.index_cast %c2_i32 : i32 to index
    %c0_48 = arith.constant 0 : index
    %c0_49 = arith.constant 0 : index
    %115 = vector.load %arg4[%114, %c0_48, %c0_49] : memref<8x8x128xf32, #tpu.memory_space<vmem>>, vector<1x8x128xf32>
    %116 = vector.shape_cast %115 : vector<1x8x128xf32> to vector<8x128xf32>
    %117 = vector.shape_cast %111 : vector<8x128xf32> to vector<1x8x128xf32>
    tpu.vector_store %arg4[%114, %c0_48, %c0_49], %117 {strides = array<i32>} : memref<8x8x128xf32, #tpu.memory_space<vmem>>, vector<1x8x128xf32>,
    %c3_i32 = arith.constant 3 : i32
    %118 = arith.index_cast %c3_i32 : i32 to index
    %c0_50 = arith.constant 0 : index
    %c0_51 = arith.constant 0 : index
    %119 = vector.load %arg2[%118, %c0_50, %c0_51] : memref<8x8x512xf32, #tpu.memory_space<vmem>>, vector<1x8x512xf32>
    %120 = vector.shape_cast %119 : vector<1x8x512xf32> to vector<8x512xf32>
    %c0_52 = arith.constant 0 : index
    %c0_53 = arith.constant 0 : index
    %121 = vector.load %arg7[%c0_52, %c0_53] : memref<8x128xf32, #tpu.memory_space<vmem>>, vector<8x128xf32>
    %cst_54 = arith.constant dense<0.000000e+00> : vector<8x512xf32>
    %122 = tpu.matmul %121, %3, %cst_54 {dimension_numbers = #tpu.dot_dimension_numbers<[1], [0], [0], [1], [0, 0, 1, 1], [], []>} : vector<8x128xf32>, vector<128x512xf32>, vector<8x512xf32> -> vector<8x512xf32>
    %123 = arith.addf %120, %122 : vector<8x512xf32>
    %124 = vector.extract_strided_slice %123 {offsets = [0, 0], sizes = [8, 128], strides = [1, 1]} : vector<8x512xf32> to vector<8x128xf32>
    %125 = arith.negf %124 : vector<8x128xf32>
    %126 = math.exp %125 : vector<8x128xf32>
    %cst_55 = arith.constant 1.000000e+00 : f32
    %127 = vector.broadcast %cst_55 : f32 to vector<8x128xf32>
    %128 = arith.addf %127, %126 : vector<8x128xf32>
    %129 = arith.divf %127, %128 : vector<8x128xf32>
    %130 = vector.extract_strided_slice %123 {offsets = [0, 128], sizes = [8, 128], strides = [1, 1]} : vector<8x512xf32> to vector<8x128xf32>
    %131 = arith.negf %130 : vector<8x128xf32>
    %132 = math.exp %131 : vector<8x128xf32>
    %cst_56 = arith.constant 1.000000e+00 : f32
    %133 = vector.broadcast %cst_56 : f32 to vector<8x128xf32>
    %134 = arith.addf %133, %132 : vector<8x128xf32>
    %135 = arith.divf %133, %134 : vector<8x128xf32>
    %136 = vector.extract_strided_slice %123 {offsets = [0, 256], sizes = [8, 128], strides = [1, 1]} : vector<8x512xf32> to vector<8x128xf32>
    %137 = math.tanh %136 : vector<8x128xf32>
    %138 = vector.extract_strided_slice %123 {offsets = [0, 384], sizes = [8, 128], strides = [1, 1]} : vector<8x512xf32> to vector<8x128xf32>
    %139 = arith.negf %138 : vector<8x128xf32>
    %140 = math.exp %139 : vector<8x128xf32>
    %cst_57 = arith.constant 1.000000e+00 : f32
    %141 = vector.broadcast %cst_57 : f32 to vector<8x128xf32>
    %142 = arith.addf %141, %140 : vector<8x128xf32>
    %143 = arith.divf %141, %142 : vector<8x128xf32>
    %c0_58 = arith.constant 0 : index
    %c0_59 = arith.constant 0 : index
    %144 = vector.load %arg8[%c0_58, %c0_59] : memref<8x128xf32, #tpu.memory_space<vmem>>, vector<8x128xf32>
    %145 = arith.mulf %135, %144 : vector<8x128xf32>
    %146 = arith.mulf %129, %137 : vector<8x128xf32>
    %147 = arith.addf %145, %146 : vector<8x128xf32>
    %148 = math.tanh %147 : vector<8x128xf32>
    %149 = arith.mulf %143, %148 : vector<8x128xf32>
    %c0_60 = arith.constant 0 : index
    %c0_61 = arith.constant 0 : index
    %150 = vector.load %arg8[%c0_60, %c0_61] : memref<8x128xf32, #tpu.memory_space<vmem>>, vector<8x128xf32>
    tpu.vector_store %arg8[%c0_60, %c0_61], %147 {strides = array<i32>} : memref<8x128xf32, #tpu.memory_space<vmem>>, vector<8x128xf32>,
    %c0_62 = arith.constant 0 : index
    %c0_63 = arith.constant 0 : index
    %151 = vector.load %arg7[%c0_62, %c0_63] : memref<8x128xf32, #tpu.memory_space<vmem>>, vector<8x128xf32>
    tpu.vector_store %arg7[%c0_62, %c0_63], %149 {strides = array<i32>} : memref<8x128xf32, #tpu.memory_space<vmem>>, vector<8x128xf32>,
    %152 = arith.index_cast %c3_i32 : i32 to index
    %c0_64 = arith.constant 0 : index
    %c0_65 = arith.constant 0 : index
    %153 = vector.load %arg4[%152, %c0_64, %c0_65] : memref<8x8x128xf32, #tpu.memory_space<vmem>>, vector<1x8x128xf32>
    %154 = vector.shape_cast %153 : vector<1x8x128xf32> to vector<8x128xf32>
    %155 = vector.shape_cast %149 : vector<8x128xf32> to vector<1x8x128xf32>
    tpu.vector_store %arg4[%152, %c0_64, %c0_65], %155 {strides = array<i32>} : memref<8x8x128xf32, #tpu.memory_space<vmem>>, vector<1x8x128xf32>,
    %c4_i32 = arith.constant 4 : i32
    %156 = arith.index_cast %c4_i32 : i32 to index
    %c0_66 = arith.constant 0 : index
    %c0_67 = arith.constant 0 : index
    %157 = vector.load %arg2[%156, %c0_66, %c0_67] : memref<8x8x512xf32, #tpu.memory_space<vmem>>, vector<1x8x512xf32>
    %158 = vector.shape_cast %157 : vector<1x8x512xf32> to vector<8x512xf32>
    %c0_68 = arith.constant 0 : index
    %c0_69 = arith.constant 0 : index
    %159 = vector.load %arg7[%c0_68, %c0_69] : memref<8x128xf32, #tpu.memory_space<vmem>>, vector<8x128xf32>
    %cst_70 = arith.constant dense<0.000000e+00> : vector<8x512xf32>
    %160 = tpu.matmul %159, %3, %cst_70 {dimension_numbers = #tpu.dot_dimension_numbers<[1], [0], [0], [1], [0, 0, 1, 1], [], []>} : vector<8x128xf32>, vector<128x512xf32>, vector<8x512xf32> -> vector<8x512xf32>
    %161 = arith.addf %158, %160 : vector<8x512xf32>
    %162 = vector.extract_strided_slice %161 {offsets = [0, 0], sizes = [8, 128], strides = [1, 1]} : vector<8x512xf32> to vector<8x128xf32>
    %163 = arith.negf %162 : vector<8x128xf32>
    %164 = math.exp %163 : vector<8x128xf32>
    %cst_71 = arith.constant 1.000000e+00 : f32
    %165 = vector.broadcast %cst_71 : f32 to vector<8x128xf32>
    %166 = arith.addf %165, %164 : vector<8x128xf32>
    %167 = arith.divf %165, %166 : vector<8x128xf32>
    %168 = vector.extract_strided_slice %161 {offsets = [0, 128], sizes = [8, 128], strides = [1, 1]} : vector<8x512xf32> to vector<8x128xf32>
    %169 = arith.negf %168 : vector<8x128xf32>
    %170 = math.exp %169 : vector<8x128xf32>
    %cst_72 = arith.constant 1.000000e+00 : f32
    %171 = vector.broadcast %cst_72 : f32 to vector<8x128xf32>
    %172 = arith.addf %171, %170 : vector<8x128xf32>
    %173 = arith.divf %171, %172 : vector<8x128xf32>
    %174 = vector.extract_strided_slice %161 {offsets = [0, 256], sizes = [8, 128], strides = [1, 1]} : vector<8x512xf32> to vector<8x128xf32>
    %175 = math.tanh %174 : vector<8x128xf32>
    %176 = vector.extract_strided_slice %161 {offsets = [0, 384], sizes = [8, 128], strides = [1, 1]} : vector<8x512xf32> to vector<8x128xf32>
    %177 = arith.negf %176 : vector<8x128xf32>
    %178 = math.exp %177 : vector<8x128xf32>
    %cst_73 = arith.constant 1.000000e+00 : f32
    %179 = vector.broadcast %cst_73 : f32 to vector<8x128xf32>
    %180 = arith.addf %179, %178 : vector<8x128xf32>
    %181 = arith.divf %179, %180 : vector<8x128xf32>
    %c0_74 = arith.constant 0 : index
    %c0_75 = arith.constant 0 : index
    %182 = vector.load %arg8[%c0_74, %c0_75] : memref<8x128xf32, #tpu.memory_space<vmem>>, vector<8x128xf32>
    %183 = arith.mulf %173, %182 : vector<8x128xf32>
    %184 = arith.mulf %167, %175 : vector<8x128xf32>
    %185 = arith.addf %183, %184 : vector<8x128xf32>
    %186 = math.tanh %185 : vector<8x128xf32>
    %187 = arith.mulf %181, %186 : vector<8x128xf32>
    %c0_76 = arith.constant 0 : index
    %c0_77 = arith.constant 0 : index
    %188 = vector.load %arg8[%c0_76, %c0_77] : memref<8x128xf32, #tpu.memory_space<vmem>>, vector<8x128xf32>
    tpu.vector_store %arg8[%c0_76, %c0_77], %185 {strides = array<i32>} : memref<8x128xf32, #tpu.memory_space<vmem>>, vector<8x128xf32>,
    %c0_78 = arith.constant 0 : index
    %c0_79 = arith.constant 0 : index
    %189 = vector.load %arg7[%c0_78, %c0_79] : memref<8x128xf32, #tpu.memory_space<vmem>>, vector<8x128xf32>
    tpu.vector_store %arg7[%c0_78, %c0_79], %187 {strides = array<i32>} : memref<8x128xf32, #tpu.memory_space<vmem>>, vector<8x128xf32>,
    %190 = arith.index_cast %c4_i32 : i32 to index
    %c0_80 = arith.constant 0 : index
    %c0_81 = arith.constant 0 : index
    %191 = vector.load %arg4[%190, %c0_80, %c0_81] : memref<8x8x128xf32, #tpu.memory_space<vmem>>, vector<1x8x128xf32>
    %192 = vector.shape_cast %191 : vector<1x8x128xf32> to vector<8x128xf32>
    %193 = vector.shape_cast %187 : vector<8x128xf32> to vector<1x8x128xf32>
    tpu.vector_store %arg4[%190, %c0_80, %c0_81], %193 {strides = array<i32>} : memref<8x8x128xf32, #tpu.memory_space<vmem>>, vector<1x8x128xf32>,
    %c5_i32 = arith.constant 5 : i32
    %194 = arith.index_cast %c5_i32 : i32 to index
    %c0_82 = arith.constant 0 : index
    %c0_83 = arith.constant 0 : index
    %195 = vector.load %arg2[%194, %c0_82, %c0_83] : memref<8x8x512xf32, #tpu.memory_space<vmem>>, vector<1x8x512xf32>
    %196 = vector.shape_cast %195 : vector<1x8x512xf32> to vector<8x512xf32>
    %c0_84 = arith.constant 0 : index
    %c0_85 = arith.constant 0 : index
    %197 = vector.load %arg7[%c0_84, %c0_85] : memref<8x128xf32, #tpu.memory_space<vmem>>, vector<8x128xf32>
    %cst_86 = arith.constant dense<0.000000e+00> : vector<8x512xf32>
    %198 = tpu.matmul %197, %3, %cst_86 {dimension_numbers = #tpu.dot_dimension_numbers<[1], [0], [0], [1], [0, 0, 1, 1], [], []>} : vector<8x128xf32>, vector<128x512xf32>, vector<8x512xf32> -> vector<8x512xf32>
    %199 = arith.addf %196, %198 : vector<8x512xf32>
    %200 = vector.extract_strided_slice %199 {offsets = [0, 0], sizes = [8, 128], strides = [1, 1]} : vector<8x512xf32> to vector<8x128xf32>
    %201 = arith.negf %200 : vector<8x128xf32>
    %202 = math.exp %201 : vector<8x128xf32>
    %cst_87 = arith.constant 1.000000e+00 : f32
    %203 = vector.broadcast %cst_87 : f32 to vector<8x128xf32>
    %204 = arith.addf %203, %202 : vector<8x128xf32>
    %205 = arith.divf %203, %204 : vector<8x128xf32>
    %206 = vector.extract_strided_slice %199 {offsets = [0, 128], sizes = [8, 128], strides = [1, 1]} : vector<8x512xf32> to vector<8x128xf32>
    %207 = arith.negf %206 : vector<8x128xf32>
    %208 = math.exp %207 : vector<8x128xf32>
    %cst_88 = arith.constant 1.000000e+00 : f32
    %209 = vector.broadcast %cst_88 : f32 to vector<8x128xf32>
    %210 = arith.addf %209, %208 : vector<8x128xf32>
    %211 = arith.divf %209, %210 : vector<8x128xf32>
    %212 = vector.extract_strided_slice %199 {offsets = [0, 256], sizes = [8, 128], strides = [1, 1]} : vector<8x512xf32> to vector<8x128xf32>
    %213 = math.tanh %212 : vector<8x128xf32>
    %214 = vector.extract_strided_slice %199 {offsets = [0, 384], sizes = [8, 128], strides = [1, 1]} : vector<8x512xf32> to vector<8x128xf32>
    %215 = arith.negf %214 : vector<8x128xf32>
    %216 = math.exp %215 : vector<8x128xf32>
    %cst_89 = arith.constant 1.000000e+00 : f32
    %217 = vector.broadcast %cst_89 : f32 to vector<8x128xf32>
    %218 = arith.addf %217, %216 : vector<8x128xf32>
    %219 = arith.divf %217, %218 : vector<8x128xf32>
    %c0_90 = arith.constant 0 : index
    %c0_91 = arith.constant 0 : index
    %220 = vector.load %arg8[%c0_90, %c0_91] : memref<8x128xf32, #tpu.memory_space<vmem>>, vector<8x128xf32>
    %221 = arith.mulf %211, %220 : vector<8x128xf32>
    %222 = arith.mulf %205, %213 : vector<8x128xf32>
    %223 = arith.addf %221, %222 : vector<8x128xf32>
    %224 = math.tanh %223 : vector<8x128xf32>
    %225 = arith.mulf %219, %224 : vector<8x128xf32>
    %c0_92 = arith.constant 0 : index
    %c0_93 = arith.constant 0 : index
    %226 = vector.load %arg8[%c0_92, %c0_93] : memref<8x128xf32, #tpu.memory_space<vmem>>, vector<8x128xf32>
    tpu.vector_store %arg8[%c0_92, %c0_93], %223 {strides = array<i32>} : memref<8x128xf32, #tpu.memory_space<vmem>>, vector<8x128xf32>,
    %c0_94 = arith.constant 0 : index
    %c0_95 = arith.constant 0 : index
    %227 = vector.load %arg7[%c0_94, %c0_95] : memref<8x128xf32, #tpu.memory_space<vmem>>, vector<8x128xf32>
    tpu.vector_store %arg7[%c0_94, %c0_95], %225 {strides = array<i32>} : memref<8x128xf32, #tpu.memory_space<vmem>>, vector<8x128xf32>,
    %228 = arith.index_cast %c5_i32 : i32 to index
    %c0_96 = arith.constant 0 : index
    %c0_97 = arith.constant 0 : index
    %229 = vector.load %arg4[%228, %c0_96, %c0_97] : memref<8x8x128xf32, #tpu.memory_space<vmem>>, vector<1x8x128xf32>
    %230 = vector.shape_cast %229 : vector<1x8x128xf32> to vector<8x128xf32>
    %231 = vector.shape_cast %225 : vector<8x128xf32> to vector<1x8x128xf32>
    tpu.vector_store %arg4[%228, %c0_96, %c0_97], %231 {strides = array<i32>} : memref<8x8x128xf32, #tpu.memory_space<vmem>>, vector<1x8x128xf32>,
    %c6_i32 = arith.constant 6 : i32
    %232 = arith.index_cast %c6_i32 : i32 to index
    %c0_98 = arith.constant 0 : index
    %c0_99 = arith.constant 0 : index
    %233 = vector.load %arg2[%232, %c0_98, %c0_99] : memref<8x8x512xf32, #tpu.memory_space<vmem>>, vector<1x8x512xf32>
    %234 = vector.shape_cast %233 : vector<1x8x512xf32> to vector<8x512xf32>
    %c0_100 = arith.constant 0 : index
    %c0_101 = arith.constant 0 : index
    %235 = vector.load %arg7[%c0_100, %c0_101] : memref<8x128xf32, #tpu.memory_space<vmem>>, vector<8x128xf32>
    %cst_102 = arith.constant dense<0.000000e+00> : vector<8x512xf32>
    %236 = tpu.matmul %235, %3, %cst_102 {dimension_numbers = #tpu.dot_dimension_numbers<[1], [0], [0], [1], [0, 0, 1, 1], [], []>} : vector<8x128xf32>, vector<128x512xf32>, vector<8x512xf32> -> vector<8x512xf32>
    %237 = arith.addf %234, %236 : vector<8x512xf32>
    %238 = vector.extract_strided_slice %237 {offsets = [0, 0], sizes = [8, 128], strides = [1, 1]} : vector<8x512xf32> to vector<8x128xf32>
    %239 = arith.negf %238 : vector<8x128xf32>
    %240 = math.exp %239 : vector<8x128xf32>
    %cst_103 = arith.constant 1.000000e+00 : f32
    %241 = vector.broadcast %cst_103 : f32 to vector<8x128xf32>
    %242 = arith.addf %241, %240 : vector<8x128xf32>
    %243 = arith.divf %241, %242 : vector<8x128xf32>
    %244 = vector.extract_strided_slice %237 {offsets = [0, 128], sizes = [8, 128], strides = [1, 1]} : vector<8x512xf32> to vector<8x128xf32>
    %245 = arith.negf %244 : vector<8x128xf32>
    %246 = math.exp %245 : vector<8x128xf32>
    %cst_104 = arith.constant 1.000000e+00 : f32
    %247 = vector.broadcast %cst_104 : f32 to vector<8x128xf32>
    %248 = arith.addf %247, %246 : vector<8x128xf32>
    %249 = arith.divf %247, %248 : vector<8x128xf32>
    %250 = vector.extract_strided_slice %237 {offsets = [0, 256], sizes = [8, 128], strides = [1, 1]} : vector<8x512xf32> to vector<8x128xf32>
    %251 = math.tanh %250 : vector<8x128xf32>
    %252 = vector.extract_strided_slice %237 {offsets = [0, 384], sizes = [8, 128], strides = [1, 1]} : vector<8x512xf32> to vector<8x128xf32>
    %253 = arith.negf %252 : vector<8x128xf32>
    %254 = math.exp %253 : vector<8x128xf32>
    %cst_105 = arith.constant 1.000000e+00 : f32
    %255 = vector.broadcast %cst_105 : f32 to vector<8x128xf32>
    %256 = arith.addf %255, %254 : vector<8x128xf32>
    %257 = arith.divf %255, %256 : vector<8x128xf32>
    %c0_106 = arith.constant 0 : index
    %c0_107 = arith.constant 0 : index
    %258 = vector.load %arg8[%c0_106, %c0_107] : memref<8x128xf32, #tpu.memory_space<vmem>>, vector<8x128xf32>
    %259 = arith.mulf %249, %258 : vector<8x128xf32>
    %260 = arith.mulf %243, %251 : vector<8x128xf32>
    %261 = arith.addf %259, %260 : vector<8x128xf32>
    %262 = math.tanh %261 : vector<8x128xf32>
    %263 = arith.mulf %257, %262 : vector<8x128xf32>
    %c0_108 = arith.constant 0 : index
    %c0_109 = arith.constant 0 : index
    %264 = vector.load %arg8[%c0_108, %c0_109] : memref<8x128xf32, #tpu.memory_space<vmem>>, vector<8x128xf32>
    tpu.vector_store %arg8[%c0_108, %c0_109], %261 {strides = array<i32>} : memref<8x128xf32, #tpu.memory_space<vmem>>, vector<8x128xf32>,
    %c0_110 = arith.constant 0 : index
    %c0_111 = arith.constant 0 : index
    %265 = vector.load %arg7[%c0_110, %c0_111] : memref<8x128xf32, #tpu.memory_space<vmem>>, vector<8x128xf32>
    tpu.vector_store %arg7[%c0_110, %c0_111], %263 {strides = array<i32>} : memref<8x128xf32, #tpu.memory_space<vmem>>, vector<8x128xf32>,
    %266 = arith.index_cast %c6_i32 : i32 to index
    %c0_112 = arith.constant 0 : index
    %c0_113 = arith.constant 0 : index
    %267 = vector.load %arg4[%266, %c0_112, %c0_113] : memref<8x8x128xf32, #tpu.memory_space<vmem>>, vector<1x8x128xf32>
    %268 = vector.shape_cast %267 : vector<1x8x128xf32> to vector<8x128xf32>
    %269 = vector.shape_cast %263 : vector<8x128xf32> to vector<1x8x128xf32>
    tpu.vector_store %arg4[%266, %c0_112, %c0_113], %269 {strides = array<i32>} : memref<8x8x128xf32, #tpu.memory_space<vmem>>, vector<1x8x128xf32>,
    %c7_i32 = arith.constant 7 : i32
    %270 = arith.index_cast %c7_i32 : i32 to index
    %c0_114 = arith.constant 0 : index
    %c0_115 = arith.constant 0 : index
    %271 = vector.load %arg2[%270, %c0_114, %c0_115] : memref<8x8x512xf32, #tpu.memory_space<vmem>>, vector<1x8x512xf32>
    %272 = vector.shape_cast %271 : vector<1x8x512xf32> to vector<8x512xf32>
    %c0_116 = arith.constant 0 : index
    %c0_117 = arith.constant 0 : index
    %273 = vector.load %arg7[%c0_116, %c0_117] : memref<8x128xf32, #tpu.memory_space<vmem>>, vector<8x128xf32>
    %cst_118 = arith.constant dense<0.000000e+00> : vector<8x512xf32>
    %274 = tpu.matmul %273, %3, %cst_118 {dimension_numbers = #tpu.dot_dimension_numbers<[1], [0], [0], [1], [0, 0, 1, 1], [], []>} : vector<8x128xf32>, vector<128x512xf32>, vector<8x512xf32> -> vector<8x512xf32>
    %275 = arith.addf %272, %274 : vector<8x512xf32>
    %276 = vector.extract_strided_slice %275 {offsets = [0, 0], sizes = [8, 128], strides = [1, 1]} : vector<8x512xf32> to vector<8x128xf32>
    %277 = arith.negf %276 : vector<8x128xf32>
    %278 = math.exp %277 : vector<8x128xf32>
    %cst_119 = arith.constant 1.000000e+00 : f32
    %279 = vector.broadcast %cst_119 : f32 to vector<8x128xf32>
    %280 = arith.addf %279, %278 : vector<8x128xf32>
    %281 = arith.divf %279, %280 : vector<8x128xf32>
    %282 = vector.extract_strided_slice %275 {offsets = [0, 128], sizes = [8, 128], strides = [1, 1]} : vector<8x512xf32> to vector<8x128xf32>
    %283 = arith.negf %282 : vector<8x128xf32>
    %284 = math.exp %283 : vector<8x128xf32>
    %cst_120 = arith.constant 1.000000e+00 : f32
    %285 = vector.broadcast %cst_120 : f32 to vector<8x128xf32>
    %286 = arith.addf %285, %284 : vector<8x128xf32>
    %287 = arith.divf %285, %286 : vector<8x128xf32>
    %288 = vector.extract_strided_slice %275 {offsets = [0, 256], sizes = [8, 128], strides = [1, 1]} : vector<8x512xf32> to vector<8x128xf32>
    %289 = math.tanh %288 : vector<8x128xf32>
    %290 = vector.extract_strided_slice %275 {offsets = [0, 384], sizes = [8, 128], strides = [1, 1]} : vector<8x512xf32> to vector<8x128xf32>
    %291 = arith.negf %290 : vector<8x128xf32>
    %292 = math.exp %291 : vector<8x128xf32>
    %cst_121 = arith.constant 1.000000e+00 : f32
    %293 = vector.broadcast %cst_121 : f32 to vector<8x128xf32>
    %294 = arith.addf %293, %292 : vector<8x128xf32>
    %295 = arith.divf %293, %294 : vector<8x128xf32>
    %c0_122 = arith.constant 0 : index
    %c0_123 = arith.constant 0 : index
    %296 = vector.load %arg8[%c0_122, %c0_123] : memref<8x128xf32, #tpu.memory_space<vmem>>, vector<8x128xf32>
    %297 = arith.mulf %287, %296 : vector<8x128xf32>
    %298 = arith.mulf %281, %289 : vector<8x128xf32>
    %299 = arith.addf %297, %298 : vector<8x128xf32>
    %300 = math.tanh %299 : vector<8x128xf32>
    %301 = arith.mulf %295, %300 : vector<8x128xf32>
    %c0_124 = arith.constant 0 : index
    %c0_125 = arith.constant 0 : index
    %302 = vector.load %arg8[%c0_124, %c0_125] : memref<8x128xf32, #tpu.memory_space<vmem>>, vector<8x128xf32>
    tpu.vector_store %arg8[%c0_124, %c0_125], %299 {strides = array<i32>} : memref<8x128xf32, #tpu.memory_space<vmem>>, vector<8x128xf32>,
    %c0_126 = arith.constant 0 : index
    %c0_127 = arith.constant 0 : index
    %303 = vector.load %arg7[%c0_126, %c0_127] : memref<8x128xf32, #tpu.memory_space<vmem>>, vector<8x128xf32>
    tpu.vector_store %arg7[%c0_126, %c0_127], %301 {strides = array<i32>} : memref<8x128xf32, #tpu.memory_space<vmem>>, vector<8x128xf32>,
    %304 = arith.index_cast %c7_i32 : i32 to index
    %c0_128 = arith.constant 0 : index
    %c0_129 = arith.constant 0 : index
    %305 = vector.load %arg4[%304, %c0_128, %c0_129] : memref<8x8x128xf32, #tpu.memory_space<vmem>>, vector<1x8x128xf32>
    %306 = vector.shape_cast %305 : vector<1x8x128xf32> to vector<8x128xf32>
    %307 = vector.shape_cast %301 : vector<8x128xf32> to vector<1x8x128xf32>
    tpu.vector_store %arg4[%304, %c0_128, %c0_129], %307 {strides = array<i32>} : memref<8x8x128xf32, #tpu.memory_space<vmem>>, vector<1x8x128xf32>,
    %c8_i32 = arith.constant 8 : i32
    %c0_i32_130 = arith.constant 0 : i32
    %308 = arith.cmpi eq, %arg1, %c0_i32_130 : i32
    %309 = arith.extui %308 : i1 to i32
    %c0_i32_131 = arith.constant 0 : i32
    %310 = arith.cmpi ne, %309, %c0_i32_131 : i32
    scf.if %310 {
      %c0_132 = arith.constant 0 : index
      %c0_133 = arith.constant 0 : index
      %311 = vector.load %arg7[%c0_132, %c0_133] : memref<8x128xf32, #tpu.memory_space<vmem>>, vector<8x128xf32>
      %c0_134 = arith.constant 0 : index
      %c0_135 = arith.constant 0 : index
      %312 = vector.load %arg5[%c0_134, %c0_135] : memref<8x128xf32, #tpu.memory_space<vmem>>, vector<8x128xf32>
      tpu.vector_store %arg5[%c0_134, %c0_135], %311 {strides = array<i32>} : memref<8x128xf32, #tpu.memory_space<vmem>>, vector<8x128xf32>,
      %c0_136 = arith.constant 0 : index
      %c0_137 = arith.constant 0 : index
      %313 = vector.load %arg8[%c0_136, %c0_137] : memref<8x128xf32, #tpu.memory_space<vmem>>, vector<8x128xf32>
      %c0_138 = arith.constant 0 : index
      %c0_139 = arith.constant 0 : index
      %314 = vector.load %arg6[%c0_138, %c0_139] : memref<8x128xf32, #tpu.memory_space<vmem>>, vector<8x128xf32>
      tpu.vector_store %arg6[%c0_138, %c0_139], %313 {strides = array<i32>} : memref<8x128xf32, #tpu.memory_space<vmem>>, vector<8x128xf32>,
    } else {
    }
    return
  }
  func.func @transform_0(%arg0: i32, %arg1: i32) -> (i32, i32, i32) {
    %c0_i32 = arith.constant 0 : i32
    %c0_i32_0 = arith.constant 0 : i32
    return %arg1, %arg0, %c0_i32 : i32, i32, i32
  }
  func.func @transform_1(%arg0: i32, %arg1: i32) -> (i32, i32) {
    %c0_i32 = arith.constant 0 : i32
    %c0_i32_0 = arith.constant 0 : i32
    %c0_i32_1 = arith.constant 0 : i32
    return %c0_i32, %c0_i32_0 : i32, i32
  }
  func.func @transform_2(%arg0: i32, %arg1: i32) -> (i32, i32, i32) {
    %c0_i32 = arith.constant 0 : i32
    %c0_i32_0 = arith.constant 0 : i32
    return %arg1, %arg0, %c0_i32 : i32, i32, i32
  }
  func.func @transform_3(%arg0: i32, %arg1: i32) -> (i32, i32) {
    %c0_i32 = arith.constant 0 : i32
    %c0_i32_0 = arith.constant 0 : i32
    return %arg0, %c0_i32 : i32, i32
  }
  func.func @transform_4(%arg0: i32, %arg1: i32) -> (i32, i32) {
    %c0_i32 = arith.constant 0 : i32
    %c0_i32_0 = arith.constant 0 : i32
    return %arg0, %c0_i32 : i32, i32
  }
}

</mosaic_0001>

<llo_original>
// kernel: tpu_custom_call.1
$region0: #{tpu_custom_call.1}
  #allocation0 [shape = 'u32[]', space=smem, size = 0x4, offset = 0x4, fixed_abs, tag = 'smem constant byte address 0x4 - core index']
  #allocation1 [shape = 'u32[144,128]{1,0:T(1,128)}', space=vmem, size = 0x12000, scoped, tag = 'internal scratch']
  #allocation2 [shape = 'f32[8,128]{1,0:T(8,128)}', space=vmem, size = 0x1000, scoped, tag = 'scratch operand']
  #allocation3 [shape = 'f32[8,128]{1,0:T(8,128)}', space=vmem, size = 0x1000, scoped, tag = 'scratch operand']
  %s0 = inlined_call_operand.hbm [shape: f32[8,8,512], index: 0, kind: input, shape index: {}]
  %s1 = inlined_call_operand.hbm [shape: f32[128,512], index: 1, kind: input, shape index: {}]
  %s2 = inlined_call_operand.hbm [shape: f32[8,8,128], index: 2, kind: output, shape index: {0}]
  %s3 = inlined_call_operand.hbm [shape: f32[8,128], index: 3, kind: output, shape index: {1}]
  %s4 = inlined_call_operand.hbm [shape: f32[8,128], index: 4, kind: output, shape index: {2}]
  %5 = xla_tuple %s2, %s3, %s4
  %s6 = sld [smem:[#allocation0]]
  $region50: #{tpu_custom_call.1} parent=0
    _
  %s8 = ssub.s32 1, %s6
  %s9 = scalar_select 0, %s8, %s6
  $region1: #{tpu_custom_call.1} parent=0
    #allocation4 [shape = 'u8[131072]{0}', space=vmem, size = 0x20000, scoped, tag = 'input window, operand 0, single buffered']
    #allocation5 [shape = 's32[1]{0}', space=sflag, size = 0x4, scoped, tag = 'scoped memory for tpu_custom_call.1']
    #allocation6 [shape = 's32[1]{0}', space=sflag, size = 0x4, scoped, tag = 'scoped memory for tpu_custom_call.1']
    #allocation7 [shape = 'u8[262144]{0}', space=vmem, size = 0x40000, scoped, tag = 'input window, operand 1, single buffered']
    #allocation8 [shape = 's32[1]{0}', space=sflag, size = 0x4, scoped, tag = 'scoped memory for tpu_custom_call.1']
    #allocation9 [shape = 'u8[32768]{0}', space=vmem, size = 0x8000, scoped, tag = 'output window, operand 0, single buffered']
    #allocation10 [shape = 'u8[4096]{0}', space=vmem, size = 0x1000, scoped, tag = 'output window, operand 1, single buffered']
    #allocation11 [shape = 's32[1]{0}', space=sflag, size = 0x4, scoped, tag = 'scoped memory for tpu_custom_call.1']
    #allocation12 [shape = 'u8[4096]{0}', space=vmem, size = 0x1000, scoped, tag = 'output window, operand 2, single buffered']
    %10 = vsyncpa [#allocation5], 0
    %11 = vsyncpa [#allocation8], 0
    %12 = vsyncpa [#allocation6], 0
    %13 = vsyncpa [#allocation11], 0
    // Predicated region
    $region2: #{tpu_custom_call.1} parent=1 // pred_check
      _
    $region3: #{tpu_custom_call.1} parent=1 // pred_check_branch
      %15 = sbr.rel (0) target = $region5
    $region4: #{tpu_custom_call.1} parent=1 // pred_region
      %s17 = ssub.s32 4096, 4096
      %18 = vsyncadd [#allocation5], %s17
      %s19 = sshll.u32 [#allocation4], 4
      %s20 = int_to_ptr.vmem [resolvable:$true] %s19
      %25 = dma.hbm_to_vmem [thread:$0]  %s0, 4096, %s20, [#allocation5], 512, 512, 32
    $region5: #{tpu_custom_call.1} parent=1 // pred_fallthru
      _
    // Predicated region
    $region6: #{tpu_custom_call.1} parent=1 // pred_check
      _
    $region7: #{tpu_custom_call.1} parent=1 // pred_check_branch
      %27 = sbr.rel (0) target = $region9
    $region8: #{tpu_custom_call.1} parent=1 // pred_region
      %s29 = ssub.s32 8192, 8192
      %30 = vsyncadd [#allocation8], %s29
      %s31 = sshll.u32 [#allocation7], 4
      %s32 = int_to_ptr.vmem [resolvable:$true] %s31
      %37 = dma.hbm_to_vmem [thread:$0]  %s1, 8192, %s32, [#allocation8], 512, 512, 32
    $region9: #{tpu_custom_call.1} parent=1 // pred_fallthru
      _
    // Predicated region
    $region10: #{tpu_custom_call.1} parent=1 // pred_check
      _
    $region11: #{tpu_custom_call.1} parent=1 // pred_check_branch
      %39 = sbr.rel (0) target = $region13
    $region12: #{tpu_custom_call.1} parent=1 // pred_region
      %40 = dma.done [#allocation5], 4096
    $region13: #{tpu_custom_call.1} parent=1 // pred_fallthru
      _
    // Predicated region
    $region14: #{tpu_custom_call.1} parent=1 // pred_check
      _
    $region15: #{tpu_custom_call.1} parent=1 // pred_check_branch
      %42 = sbr.rel (0) target = $region17
    $region16: #{tpu_custom_call.1} parent=1 // pred_region
      %43 = dma.done [#allocation8], 8192
    $region17: #{tpu_custom_call.1} parent=1 // pred_fallthru
      _
    %p44 = scmp.eq.s32.totalorder 0, 0
    // Predicated region
    $region18: #{tpu_custom_call.1} parent=1 // pred_check
      %p45 = pneg %p44
    $region19: #{tpu_custom_call.1} parent=1 // pred_check_branch
      %47 = sbr.rel (%p45) target = $region21
    $region20: #{tpu_custom_call.1} parent=1 // pred_region
      %48 = vst [vmem:[#allocation2] sm:$0xff] 0.0
      %49 = vst [vmem:[#allocation3] sm:$0xff] 0.0
    $region21: #{tpu_custom_call.1} parent=1 // pred_fallthru
      _
    %v50 = vld [vmem:[#allocation7] sm:$0xff]
    %v51 = vld [vmem:[#allocation7 + $0x8] sm:$0xff]
    %v52 = vld [vmem:[#allocation7 + $0x10] sm:$0xff]
    %v53 = vld [vmem:[#allocation7 + $0x18] sm:$0xff]
    %v54 = vld [vmem:[#allocation7 + $0x20] sm:$0xff]
    %v55 = vld [vmem:[#allocation7 + $0x28] sm:$0xff]
    %v56 = vld [vmem:[#allocation7 + $0x30] sm:$0xff]
    %v57 = vld [vmem:[#allocation7 + $0x38] sm:$0xff]
    %v58 = vld [vmem:[#allocation7 + $0x40] sm:$0xff]
    %v59 = vld [vmem:[#allocation7 + $0x48] sm:$0xff]
    %v60 = vld [vmem:[#allocation7 + $0x50] sm:$0xff]
    %v61 = vld [vmem:[#allocation7 + $0x58] sm:$0xff]
    %v62 = vld [vmem:[#allocation7 + $0x60] sm:$0xff]
    %v63 = vld [vmem:[#allocation7 + $0x68] sm:$0xff]
    %v64 = vld [vmem:[#allocation7 + $0x70] sm:$0xff]
    %v65 = vld [vmem:[#allocation7 + $0x78] sm:$0xff]
    %v66 = vld [vmem:[#allocation7 + $0x80] sm:$0xff]
    %v67 = vld [vmem:[#allocation7 + $0x88] sm:$0xff]
    %v68 = vld [vmem:[#allocation7 + $0x90] sm:$0xff]
    %v69 = vld [vmem:[#allocation7 + $0x98] sm:$0xff]
    %v70 = vld [vmem:[#allocation7 + $0xa0] sm:$0xff]
    %v71 = vld [vmem:[#allocation7 + $0xa8] sm:$0xff]
    %v72 = vld [vmem:[#allocation7 + $0xb0] sm:$0xff]
    %v73 = vld [vmem:[#allocation7 + $0xb8] sm:$0xff]
    %v74 = vld [vmem:[#allocation7 + $0xc0] sm:$0xff]
    %v75 = vld [vmem:[#allocation7 + $0xc8] sm:$0xff]
    %v76 = vld [vmem:[#allocation7 + $0xd0] sm:$0xff]
    %v77 = vld [vmem:[#allocation7 + $0xd8] sm:$0xff]
    %v78 = vld [vmem:[#allocation7 + $0xe0] sm:$0xff]
    %v79 = vld [vmem:[#allocation7 + $0xe8] sm:$0xff]
    %v80 = vld [vmem:[#allocation7 + $0xf0] sm:$0xff]
    %v81 = vld [vmem:[#allocation7 + $0xf8] sm:$0xff]
    %v82 = vld [vmem:[#allocation7 + $0x100] sm:$0xff]
    %v83 = vld [vmem:[#allocation7 + $0x108] sm:$0xff]
    %v84 = vld [vmem:[#allocation7 + $0x110] sm:$0xff]
    %v85 = vld [vmem:[#allocation7 + $0x118] sm:$0xff]
    %v86 = vld [vmem:[#allocation7 + $0x120] sm:$0xff]
    %v87 = vld [vmem:[#allocation7 + $0x128] sm:$0xff]
    %v88 = vld [vmem:[#allocation7 + $0x130] sm:$0xff]
    %v89 = vld [vmem:[#allocation7 + $0x138] sm:$0xff]
    %v90 = vld [vmem:[#allocation7 + $0x140] sm:$0xff]
    %v91 = vld [vmem:[#allocation7 + $0x148] sm:$0xff]
    %v92 = vld [vmem:[#allocation7 + $0x150] sm:$0xff]
    %v93 = vld [vmem:[#allocation7 + $0x158] sm:$0xff]
    %v94 = vld [vmem:[#allocation7 + $0x160] sm:$0xff]
    %v95 = vld [vmem:[#allocation7 + $0x168] sm:$0xff]
    %v96 = vld [vmem:[#allocation7 + $0x170] sm:$0xff]
    %v97 = vld [vmem:[#allocation7 + $0x178] sm:$0xff]
    %v98 = vld [vmem:[#allocation7 + $0x180] sm:$0xff]
    %v99 = vld [vmem:[#allocation7 + $0x188] sm:$0xff]
    %v100 = vld [vmem:[#allocation7 + $0x190] sm:$0xff]
    %v101 = vld [vmem:[#allocation7 + $0x198] sm:$0xff]
    %v102 = vld [vmem:[#allocation7 + $0x1a0] sm:$0xff]
    %v103 = vld [vmem:[#allocation7 + $0x1a8] sm:$0xff]
    %v104 = vld [vmem:[#allocation7 + $0x1b0] sm:$0xff]
    %v105 = vld [vmem:[#allocation7 + $0x1b8] sm:$0xff]
    %v106 = vld [vmem:[#allocation7 + $0x1c0] sm:$0xff]
    %v107 = vld [vmem:[#allocation7 + $0x1c8] sm:$0xff]
    %v108 = vld [vmem:[#allocation7 + $0x1d0] sm:$0xff]
    %v109 = vld [vmem:[#allocation7 + $0x1d8] sm:$0xff]
    %v110 = vld [vmem:[#allocation7 + $0x1e0] sm:$0xff]
    %v111 = vld [vmem:[#allocation7 + $0x1e8] sm:$0xff]
    %v112 = vld [vmem:[#allocation7 + $0x1f0] sm:$0xff]
    %v113 = vld [vmem:[#allocation7 + $0x1f8] sm:$0xff]
    %v114 = vld [vmem:[#allocation4] sm:$0xff]
    %v115 = vld [vmem:[#allocation4 + $0x8] sm:$0xff]
    %v116 = vld [vmem:[#allocation4 + $0x10] sm:$0xff]
    %v117 = vld [vmem:[#allocation4 + $0x18] sm:$0xff]
    %v118 = vld [vmem:[#allocation2] sm:$0xff]
    %119 = vmatprep.subr.mxu0 %v51
    %120 = vmatpush1.msra.mxu0 %v50
    %121 = vmatprep.subr.mxu0 %v55
    %122 = vmatpush1.msra.mxu0 %v54
    %123 = vmatprep.subr.mxu0 %v59
    %124 = vmatpush1.msra.mxu0 %v58
    %125 = vmatprep.subr.mxu0 %v63
    %126 = vmatpush1.msra.mxu0 %v62
    %127 = vmatprep.subr.mxu0 %v67
    %128 = vmatpush1.msra.mxu0 %v66
    %129 = vmatprep.subr.mxu0 %v71
    %130 = vmatpush1.msra.mxu0 %v70
    %131 = vmatprep.subr.mxu0 %v75
    %132 = vmatpush1.msra.mxu0 %v74
    %133 = vmatprep.subr.mxu0 %v79
    %134 = vmatpush1.msra.mxu0 %v78
    %135 = vmatprep.subr.mxu0 %v83
    %136 = vmatpush1.msra.mxu0 %v82
    %137 = vmatprep.subr.mxu0 %v87
    %138 = vmatpush1.msra.mxu0 %v86
    %139 = vmatprep.subr.mxu0 %v91
    %140 = vmatpush1.msra.mxu0 %v90
    %141 = vmatprep.subr.mxu0 %v95
    %142 = vmatpush1.msra.mxu0 %v94
    %143 = vmatprep.subr.mxu0 %v99
    %144 = vmatpush1.msra.mxu0 %v98
    %145 = vmatprep.subr.mxu0 %v103
    %146 = vmatpush1.msra.mxu0 %v102
    %147 = vmatprep.subr.mxu0 %v107
    %148 = vmatpush1.msra.mxu0 %v106
    %149 = vmatprep.subr.mxu0 %v111
    %150 = vmatpush1.msra.mxu0 %v110
    %151 = vmatprep.subr.mxu0 0.0
    %152 = vmatpush1.msra.mxu0 0.0
    %153 = vmatprep.subr.mxu0 0.0
    %154 = vmatpush1.msra.mxu0 0.0
    %155 = vmatprep.subr.mxu0 0.0
    %156 = vmatpush1.msra.mxu0 0.0
    %157 = vmatprep.subr.mxu0 0.0
    %158 = vmatpush1.msra.mxu0 0.0
    %159 = vmatprep.subr.mxu0 0.0
    %160 = vmatpush1.msra.mxu0 0.0
    %161 = vmatprep.subr.mxu0 0.0
    %162 = vmatpush1.msra.mxu0 0.0
    %163 = vmatprep.subr.mxu0 0.0
    %164 = vmatpush1.msra.mxu0 0.0
    %165 = vmatprep.subr.mxu0 0.0
    %166 = vmatpush1.msra.mxu0 0.0
    %167 = vmatprep.subr.mxu0 0.0
    %168 = vmatpush1.msra.mxu0 0.0
    %169 = vmatprep.subr.mxu0 0.0
    %170 = vmatpush1.msra.mxu0 0.0
    %171 = vmatprep.subr.mxu0 0.0
    %172 = vmatpush1.msra.mxu0 0.0
    %173 = vmatprep.subr.mxu0 0.0
    %174 = vmatpush1.msra.mxu0 0.0
    %175 = vmatprep.subr.mxu0 0.0
    %176 = vmatpush1.msra.mxu0 0.0
    %177 = vmatprep.subr.mxu0 0.0
    %178 = vmatpush1.msra.mxu0 0.0
    %179 = vmatprep.subr.mxu0 0.0
    %180 = vmatpush1.msra.mxu0 0.0
    %181 = vmatprep.subr.mxu0 0.0
    %182 = vmatpush1.msra.mxu0 0.0
    %183 = vmatprep.mubr.f32.mxu0 0.0
    %184 = vmatmul.mubr.f32.gmra.mrb[0].mxu0 %v118
    %v185 = vpop.f32.mrb[0].mxu0
    %v186 = vadd.f32 0.0, %v185
    %v187 = vpop.f32.mrb[0].mxu0
    %v188 = vadd.f32 0.0, %v187
    %189 = vdwg.mxu0
    %190 = vmatprep.subr.mxu0 %v53
    %191 = vmatpush1.msra.mxu0 %v52
    %192 = vmatprep.subr.mxu0 %v57
    %193 = vmatpush1.msra.mxu0 %v56
    %194 = vmatprep.subr.mxu0 %v61
    %195 = vmatpush1.msra.mxu0 %v60
    %196 = vmatprep.subr.mxu0 %v65
    %197 = vmatpush1.msra.mxu0 %v64
    %198 = vmatprep.subr.mxu0 %v69
    %199 = vmatpush1.msra.mxu0 %v68
    %200 = vmatprep.subr.mxu0 %v73
    %201 = vmatpush1.msra.mxu0 %v72
    %202 = vmatprep.subr.mxu0 %v77
    %203 = vmatpush1.msra.mxu0 %v76
    %204 = vmatprep.subr.mxu0 %v81
    %205 = vmatpush1.msra.mxu0 %v80
    %206 = vmatprep.subr.mxu0 %v85
    %207 = vmatpush1.msra.mxu0 %v84
    %208 = vmatprep.subr.mxu0 %v89
    %209 = vmatpush1.msra.mxu0 %v88
    %210 = vmatprep.subr.mxu0 %v93
    %211 = vmatpush1.msra.mxu0 %v92
    %212 = vmatprep.subr.mxu0 %v97
    %213 = vmatpush1.msra.mxu0 %v96
    %214 = vmatprep.subr.mxu0 %v101
    %215 = vmatpush1.msra.mxu0 %v100
    %216 = vmatprep.subr.mxu0 %v105
    %217 = vmatpush1.msra.mxu0 %v104
    %218 = vmatprep.subr.mxu0 %v109
    %219 = vmatpush1.msra.mxu0 %v108
    %220 = vmatprep.subr.mxu0 %v113
    %221 = vmatpush1.msra.mxu0 %v112
    %222 = vmatprep.subr.mxu0 0.0
    %223 = vmatpush1.msra.mxu0 0.0
    %224 = vmatprep.subr.mxu0 0.0
    %225 = vmatpush1.msra.mxu0 0.0
    %226 = vmatprep.subr.mxu0 0.0
    %227 = vmatpush1.msra.mxu0 0.0
    %228 = vmatprep.subr.mxu0 0.0
    %229 = vmatpush1.msra.mxu0 0.0
    %230 = vmatprep.subr.mxu0 0.0
    %231 = vmatpush1.msra.mxu0 0.0
    %232 = vmatprep.subr.mxu0 0.0
    %233 = vmatpush1.msra.mxu0 0.0
    %234 = vmatprep.subr.mxu0 0.0
    %235 = vmatpush1.msra.mxu0 0.0
    %236 = vmatprep.subr.mxu0 0.0
    %237 = vmatpush1.msra.mxu0 0.0
    %238 = vmatprep.subr.mxu0 0.0
    %239 = vmatpush1.msra.mxu0 0.0
    %240 = vmatprep.subr.mxu0 0.0
    %241 = vmatpush1.msra.mxu0 0.0
    %242 = vmatprep.subr.mxu0 0.0
    %243 = vmatpush1.msra.mxu0 0.0
    %244 = vmatprep.subr.mxu0 0.0
    %245 = vmatpush1.msra.mxu0 0.0
    %246 = vmatprep.subr.mxu0 0.0
    %247 = vmatpush1.msra.mxu0 0.0
    %248 = vmatprep.subr.mxu0 0.0
    %249 = vmatpush1.msra.mxu0 0.0
    %250 = vmatprep.subr.mxu0 0.0
    %251 = vmatpush1.msra.mxu0 0.0
    %252 = vmatprep.subr.mxu0 0.0
    %253 = vmatpush1.msra.mxu0 0.0
    %254 = vmatprep.mubr.f32.mxu0 0.0
    %255 = vmatmul.mubr.f32.gmra.mrb[0].mxu0 %v118
    %v256 = vpop.f32.mrb[0].mxu0
    %v257 = vadd.f32 0.0, %v256
    %v258 = vpop.f32.mrb[0].mxu0
    %v259 = vadd.f32 0.0, %v258
    %260 = vdwg.mxu0
    %v261 = vadd.f32 %v114, %v186
    %v262 = vadd.f32 %v115, %v188
    %v263 = vadd.f32 %v116, %v257
    %v264 = vadd.f32 %v117, %v259
    %v265 = vxor.u32 %v261, 2147483648
    %v266 = vmul.f32 %v265, 1.442695
    %v267 = vpow.pop %v266
    %v268 = vadd.f32 %v267, 1.0
    %v269 = vrcp.pop %v268
    %v270 = vmul.f32 1.0, %v269
    %v271 = vxor.u32 %v262, 2147483648
    %v272 = vmul.f32 %v271, 1.442695
    %v273 = vpow.pop %v272
    %v274 = vadd.f32 %v273, 1.0
    %v275 = vrcp.pop %v274
    %v276 = vmul.f32 1.0, %v275
    %v277 = vtanh.pop %v263
    %v278 = vxor.u32 %v264, 2147483648
    %v279 = vmul.f32 %v278, 1.442695
    %v280 = vpow.pop %v279
    %v281 = vadd.f32 %v280, 1.0
    %v282 = vrcp.pop %v281
    %v283 = vmul.f32 1.0, %v282
    %v284 = vld [vmem:[#allocation3] sm:$0xff]
    %v285 = vmul.f32 %v276, %v284
    %v286 = vmul.f32 %v270, %v277
    %v287 = vadd.f32 %v285, %v286
    %v288 = vtanh.pop %v287
    %v289 = vmul.f32 %v283, %v288
    %290 = vst [vmem:[#allocation3] sm:$0xff] %v287
    %291 = vst [vmem:[#allocation2] sm:$0xff] %v289
    %292 = vst [vmem:[#allocation9] sm:$0xff] %v289
    %s293 = scalar_lea.vmem [#allocation4], 32
    %v294 = vld [vmem:[%s293] sm:$0xff]
    %v295 = vld [vmem:[%s293 + $0x8] sm:$0xff]
    %v296 = vld [vmem:[%s293 + $0x10] sm:$0xff]
    %v297 = vld [vmem:[%s293 + $0x18] sm:$0xff]
    %v298 = vld [vmem:[#allocation2] sm:$0xff]
    %299 = vmatprep.subr.mxu0 %v51
    %300 = vmatpush1.msra.mxu0 %v50
    %301 = vmatprep.subr.mxu0 %v55
    %302 = vmatpush1.msra.mxu0 %v54
    %303 = vmatprep.subr.mxu0 %v59
    %304 = vmatpush1.msra.mxu0 %v58
    %305 = vmatprep.subr.mxu0 %v63
    %306 = vmatpush1.msra.mxu0 %v62
    %307 = vmatprep.subr.mxu0 %v67
    %308 = vmatpush1.msra.mxu0 %v66
    %309 = vmatprep.subr.mxu0 %v71
    %310 = vmatpush1.msra.mxu0 %v70
    %311 = vmatprep.subr.mxu0 %v75
    %312 = vmatpush1.msra.mxu0 %v74
    %313 = vmatprep.subr.mxu0 %v79
    %314 = vmatpush1.msra.mxu0 %v78
    %315 = vmatprep.subr.mxu0 %v83
    %316 = vmatpush1.msra.mxu0 %v82
    %317 = vmatprep.subr.mxu0 %v87
    %318 = vmatpush1.msra.mxu0 %v86
    %319 = vmatprep.subr.mxu0 %v91
    %320 = vmatpush1.msra.mxu0 %v90
    %321 = vmatprep.subr.mxu0 %v95
    %322 = vmatpush1.msra.mxu0 %v94
    %323 = vmatprep.subr.mxu0 %v99
    %324 = vmatpush1.msra.mxu0 %v98
    %325 = vmatprep.subr.mxu0 %v103
    %326 = vmatpush1.msra.mxu0 %v102
    %327 = vmatprep.subr.mxu0 %v107
    %328 = vmatpush1.msra.mxu0 %v106
    %329 = vmatprep.subr.mxu0 %v111
    %330 = vmatpush1.msra.mxu0 %v110
    %331 = vmatprep.subr.mxu0 0.0
    %332 = vmatpush1.msra.mxu0 0.0
    %333 = vmatprep.subr.mxu0 0.0
    %334 = vmatpush1.msra.mxu0 0.0
    %335 = vmatprep.subr.mxu0 0.0
    %336 = vmatpush1.msra.mxu0 0.0
    %337 = vmatprep.subr.mxu0 0.0
    %338 = vmatpush1.msra.mxu0 0.0
    %339 = vmatprep.subr.mxu0 0.0
    %340 = vmatpush1.msra.mxu0 0.0
    %341 = vmatprep.subr.mxu0 0.0
    %342 = vmatpush1.msra.mxu0 0.0
    %343 = vmatprep.subr.mxu0 0.0
    %344 = vmatpush1.msra.mxu0 0.0
    %345 = vmatprep.subr.mxu0 0.0
    %346 = vmatpush1.msra.mxu0 0.0
    %347 = vmatprep.subr.mxu0 0.0
    %348 = vmatpush1.msra.mxu0 0.0
    %349 = vmatprep.subr.mxu0 0.0
    %350 = vmatpush1.msra.mxu0 0.0
    %351 = vmatprep.subr.mxu0 0.0
    %352 = vmatpush1.msra.mxu0 0.0
    %353 = vmatprep.subr.mxu0 0.0
    %354 = vmatpush1.msra.mxu0 0.0
    %355 = vmatprep.subr.mxu0 0.0
    %356 = vmatpush1.msra.mxu0 0.0
    %357 = vmatprep.subr.mxu0 0.0
    %358 = vmatpush1.msra.mxu0 0.0
    %359 = vmatprep.subr.mxu0 0.0
    %360 = vmatpush1.msra.mxu0 0.0
    %361 = vmatprep.subr.mxu0 0.0
    %362 = vmatpush1.msra.mxu0 0.0
    %363 = vmatprep.mubr.f32.mxu0 0.0
    %364 = vmatmul.mubr.f32.gmra.mrb[0].mxu0 %v298
    %v365 = vpop.f32.mrb[0].mxu0
    %v366 = vadd.f32 0.0, %v365
    %v367 = vpop.f32.mrb[0].mxu0
    %v368 = vadd.f32 0.0, %v367
    %369 = vdwg.mxu0
    %370 = vmatprep.subr.mxu0 %v53
    %371 = vmatpush1.msra.mxu0 %v52
    %372 = vmatprep.subr.mxu0 %v57
    %373 = vmatpush1.msra.mxu0 %v56
    %374 = vmatprep.subr.mxu0 %v61
    %375 = vmatpush1.msra.mxu0 %v60
    %376 = vmatprep.subr.mxu0 %v65
    %377 = vmatpush1.msra.mxu0 %v64
    %378 = vmatprep.subr.mxu0 %v69
    %379 = vmatpush1.msra.mxu0 %v68
    %380 = vmatprep.subr.mxu0 %v73
    %381 = vmatpush1.msra.mxu0 %v72
    %382 = vmatprep.subr.mxu0 %v77
    %383 = vmatpush1.msra.mxu0 %v76
    %384 = vmatprep.subr.mxu0 %v81
    %385 = vmatpush1.msra.mxu0 %v80
    %386 = vmatprep.subr.mxu0 %v85
    %387 = vmatpush1.msra.mxu0 %v84
    %388 = vmatprep.subr.mxu0 %v89
    %389 = vmatpush1.msra.mxu0 %v88
    %390 = vmatprep.subr.mxu0 %v93
    %391 = vmatpush1.msra.mxu0 %v92
    %392 = vmatprep.subr.mxu0 %v97
    %393 = vmatpush1.msra.mxu0 %v96
    %394 = vmatprep.subr.mxu0 %v101
    %395 = vmatpush1.msra.mxu0 %v100
    %396 = vmatprep.subr.mxu0 %v105
    %397 = vmatpush1.msra.mxu0 %v104
    %398 = vmatprep.subr.mxu0 %v109
    %399 = vmatpush1.msra.mxu0 %v108
    %400 = vmatprep.subr.mxu0 %v113
    %401 = vmatpush1.msra.mxu0 %v112
    %402 = vmatprep.subr.mxu0 0.0
    %403 = vmatpush1.msra.mxu0 0.0
    %404 = vmatprep.subr.mxu0 0.0
    %405 = vmatpush1.msra.mxu0 0.0
    %406 = vmatprep.subr.mxu0 0.0
    %407 = vmatpush1.msra.mxu0 0.0
    %408 = vmatprep.subr.mxu0 0.0
    %409 = vmatpush1.msra.mxu0 0.0
    %410 = vmatprep.subr.mxu0 0.0
    %411 = vmatpush1.msra.mxu0 0.0
    %412 = vmatprep.subr.mxu0 0.0
    %413 = vmatpush1.msra.mxu0 0.0
    %414 = vmatprep.subr.mxu0 0.0
    %415 = vmatpush1.msra.mxu0 0.0
    %416 = vmatprep.subr.mxu0 0.0
    %417 = vmatpush1.msra.mxu0 0.0
    %418 = vmatprep.subr.mxu0 0.0
    %419 = vmatpush1.msra.mxu0 0.0
    %420 = vmatprep.subr.mxu0 0.0
    %421 = vmatpush1.msra.mxu0 0.0
    %422 = vmatprep.subr.mxu0 0.0
    %423 = vmatpush1.msra.mxu0 0.0
    %424 = vmatprep.subr.mxu0 0.0
    %425 = vmatpush1.msra.mxu0 0.0
    %426 = vmatprep.subr.mxu0 0.0
    %427 = vmatpush1.msra.mxu0 0.0
    %428 = vmatprep.subr.mxu0 0.0
    %429 = vmatpush1.msra.mxu0 0.0
    %430 = vmatprep.subr.mxu0 0.0
    %431 = vmatpush1.msra.mxu0 0.0
    %432 = vmatprep.subr.mxu0 0.0
    %433 = vmatpush1.msra.mxu0 0.0
    %434 = vmatprep.mubr.f32.mxu0 0.0
    %435 = vmatmul.mubr.f32.gmra.mrb[0].mxu0 %v298
    %v436 = vpop.f32.mrb[0].mxu0
    %v437 = vadd.f32 0.0, %v436
    %v438 = vpop.f32.mrb[0].mxu0
    %v439 = vadd.f32 0.0, %v438
    %440 = vdwg.mxu0
    %v441 = vadd.f32 %v294, %v366
    %v442 = vadd.f32 %v295, %v368
    %v443 = vadd.f32 %v296, %v437
    %v444 = vadd.f32 %v297, %v439
    %v445 = vxor.u32 %v441, 2147483648
    %v446 = vmul.f32 %v445, 1.442695
    %v447 = vpow.pop %v446
    %v448 = vadd.f32 %v447, 1.0
    %v449 = vrcp.pop %v448
    %v450 = vmul.f32 1.0, %v449
    %v451 = vxor.u32 %v442, 2147483648
    %v452 = vmul.f32 %v451, 1.442695
    %v453 = vpow.pop %v452
    %v454 = vadd.f32 %v453, 1.0
    %v455 = vrcp.pop %v454
    %v456 = vmul.f32 1.0, %v455
    %v457 = vtanh.pop %v443
    %v458 = vxor.u32 %v444, 2147483648
    %v459 = vmul.f32 %v458, 1.442695
    %v460 = vpow.pop %v459
    %v461 = vadd.f32 %v460, 1.0
    %v462 = vrcp.pop %v461
    %v463 = vmul.f32 1.0, %v462
    %v464 = vld [vmem:[#allocation3] sm:$0xff]
    %v465 = vmul.f32 %v456, %v464
    %v466 = vmul.f32 %v450, %v457
    %v467 = vadd.f32 %v465, %v466
    %v468 = vtanh.pop %v467
    %v469 = vmul.f32 %v463, %v468
    %470 = vst [vmem:[#allocation3] sm:$0xff] %v467
    %471 = vst [vmem:[#allocation2] sm:$0xff] %v469
    %s472 = scalar_lea.vmem [#allocation9], 8
    %473 = vst [vmem:[%s472] sm:$0xff] %v469
    %s474 = scalar_lea.vmem [#allocation4], 64
    %v475 = vld [vmem:[%s474] sm:$0xff]
    %v476 = vld [vmem:[%s474 + $0x8] sm:$0xff]
    %v477 = vld [vmem:[%s474 + $0x10] sm:$0xff]
    %v478 = vld [vmem:[%s474 + $0x18] sm:$0xff]
    %v479 = vld [vmem:[#allocation2] sm:$0xff]
    %480 = vmatprep.subr.mxu0 %v51
    %481 = vmatpush1.msra.mxu0 %v50
    %482 = vmatprep.subr.mxu0 %v55
    %483 = vmatpush1.msra.mxu0 %v54
    %484 = vmatprep.subr.mxu0 %v59
    %485 = vmatpush1.msra.mxu0 %v58
    %486 = vmatprep.subr.mxu0 %v63
    %487 = vmatpush1.msra.mxu0 %v62
    %488 = vmatprep.subr.mxu0 %v67
    %489 = vmatpush1.msra.mxu0 %v66
    %490 = vmatprep.subr.mxu0 %v71
    %491 = vmatpush1.msra.mxu0 %v70
    %492 = vmatprep.subr.mxu0 %v75
    %493 = vmatpush1.msra.mxu0 %v74
    %494 = vmatprep.subr.mxu0 %v79
    %495 = vmatpush1.msra.mxu0 %v78
    %496 = vmatprep.subr.mxu0 %v83
    %497 = vmatpush1.msra.mxu0 %v82
    %498 = vmatprep.subr.mxu0 %v87
    %499 = vmatpush1.msra.mxu0 %v86
    %500 = vmatprep.subr.mxu0 %v91
    %501 = vmatpush1.msra.mxu0 %v90
    %502 = vmatprep.subr.mxu0 %v95
    %503 = vmatpush1.msra.mxu0 %v94
    %504 = vmatprep.subr.mxu0 %v99
    %505 = vmatpush1.msra.mxu0 %v98
    %506 = vmatprep.subr.mxu0 %v103
    %507 = vmatpush1.msra.mxu0 %v102
    %508 = vmatprep.subr.mxu0 %v107
    %509 = vmatpush1.msra.mxu0 %v106
    %510 = vmatprep.subr.mxu0 %v111
    %511 = vmatpush1.msra.mxu0 %v110
    %512 = vmatprep.subr.mxu0 0.0
    %513 = vmatpush1.msra.mxu0 0.0
    %514 = vmatprep.subr.mxu0 0.0
    %515 = vmatpush1.msra.mxu0 0.0
    %516 = vmatprep.subr.mxu0 0.0
    %517 = vmatpush1.msra.mxu0 0.0
    %518 = vmatprep.subr.mxu0 0.0
    %519 = vmatpush1.msra.mxu0 0.0
    %520 = vmatprep.subr.mxu0 0.0
    %521 = vmatpush1.msra.mxu0 0.0
    %522 = vmatprep.subr.mxu0 0.0
    %523 = vmatpush1.msra.mxu0 0.0
    %524 = vmatprep.subr.mxu0 0.0
    %525 = vmatpush1.msra.mxu0 0.0
    %526 = vmatprep.subr.mxu0 0.0
    %527 = vmatpush1.msra.mxu0 0.0
    %528 = vmatprep.subr.mxu0 0.0
    %529 = vmatpush1.msra.mxu0 0.0
    %530 = vmatprep.subr.mxu0 0.0
    %531 = vmatpush1.msra.mxu0 0.0
    %532 = vmatprep.subr.mxu0 0.0
    %533 = vmatpush1.msra.mxu0 0.0
    %534 = vmatprep.subr.mxu0 0.0
    %535 = vmatpush1.msra.mxu0 0.0
    %536 = vmatprep.subr.mxu0 0.0
    %537 = vmatpush1.msra.mxu0 0.0
    %538 = vmatprep.subr.mxu0 0.0
    %539 = vmatpush1.msra.mxu0 0.0
    %540 = vmatprep.subr.mxu0 0.0
    %541 = vmatpush1.msra.mxu0 0.0
    %542 = vmatprep.subr.mxu0 0.0
    %543 = vmatpush1.msra.mxu0 0.0
    %544 = vmatprep.mubr.f32.mxu0 0.0
    %545 = vmatmul.mubr.f32.gmra.mrb[0].mxu0 %v479
    %v546 = vpop.f32.mrb[0].mxu0
    %v547 = vadd.f32 0.0, %v546
    %v548 = vpop.f32.mrb[0].mxu0
    %v549 = vadd.f32 0.0, %v548
    %550 = vdwg.mxu0
    %551 = vmatprep.subr.mxu0 %v53
    %552 = vmatpush1.msra.mxu0 %v52
    %553 = vmatprep.subr.mxu0 %v57
    %554 = vmatpush1.msra.mxu0 %v56
    %555 = vmatprep.subr.mxu0 %v61
    %556 = vmatpush1.msra.mxu0 %v60
    %557 = vmatprep.subr.mxu0 %v65
    %558 = vmatpush1.msra.mxu0 %v64
    %559 = vmatprep.subr.mxu0 %v69
    %560 = vmatpush1.msra.mxu0 %v68
    %561 = vmatprep.subr.mxu0 %v73
    %562 = vmatpush1.msra.mxu0 %v72
    %563 = vmatprep.subr.mxu0 %v77
    %564 = vmatpush1.msra.mxu0 %v76
    %565 = vmatprep.subr.mxu0 %v81
    %566 = vmatpush1.msra.mxu0 %v80
    %567 = vmatprep.subr.mxu0 %v85
    %568 = vmatpush1.msra.mxu0 %v84
    %569 = vmatprep.subr.mxu0 %v89
    %570 = vmatpush1.msra.mxu0 %v88
    %571 = vmatprep.subr.mxu0 %v93
    %572 = vmatpush1.msra.mxu0 %v92
    %573 = vmatprep.subr.mxu0 %v97
    %574 = vmatpush1.msra.mxu0 %v96
    %575 = vmatprep.subr.mxu0 %v101
    %576 = vmatpush1.msra.mxu0 %v100
    %577 = vmatprep.subr.mxu0 %v105
    %578 = vmatpush1.msra.mxu0 %v104
    %579 = vmatprep.subr.mxu0 %v109
    %580 = vmatpush1.msra.mxu0 %v108
    %581 = vmatprep.subr.mxu0 %v113
    %582 = vmatpush1.msra.mxu0 %v112
    %583 = vmatprep.subr.mxu0 0.0
    %584 = vmatpush1.msra.mxu0 0.0
    %585 = vmatprep.subr.mxu0 0.0
    %586 = vmatpush1.msra.mxu0 0.0
    %587 = vmatprep.subr.mxu0 0.0
    %588 = vmatpush1.msra.mxu0 0.0
    %589 = vmatprep.subr.mxu0 0.0
    %590 = vmatpush1.msra.mxu0 0.0
    %591 = vmatprep.subr.mxu0 0.0
    %592 = vmatpush1.msra.mxu0 0.0
    %593 = vmatprep.subr.mxu0 0.0
    %594 = vmatpush1.msra.mxu0 0.0
    %595 = vmatprep.subr.mxu0 0.0
    %596 = vmatpush1.msra.mxu0 0.0
    %597 = vmatprep.subr.mxu0 0.0
    %598 = vmatpush1.msra.mxu0 0.0
    %599 = vmatprep.subr.mxu0 0.0
    %600 = vmatpush1.msra.mxu0 0.0
    %601 = vmatprep.subr.mxu0 0.0
    %602 = vmatpush1.msra.mxu0 0.0
    %603 = vmatprep.subr.mxu0 0.0
    %604 = vmatpush1.msra.mxu0 0.0
    %605 = vmatprep.subr.mxu0 0.0
    %606 = vmatpush1.msra.mxu0 0.0
    %607 = vmatprep.subr.mxu0 0.0
    %608 = vmatpush1.msra.mxu0 0.0
    %609 = vmatprep.subr.mxu0 0.0
    %610 = vmatpush1.msra.mxu0 0.0
    %611 = vmatprep.subr.mxu0 0.0
    %612 = vmatpush1.msra.mxu0 0.0
    %613 = vmatprep.subr.mxu0 0.0
    %614 = vmatpush1.msra.mxu0 0.0
    %615 = vmatprep.mubr.f32.mxu0 0.0
    %616 = vmatmul.mubr.f32.gmra.mrb[0].mxu0 %v479
    %v617 = vpop.f32.mrb[0].mxu0
    %v618 = vadd.f32 0.0, %v617
    %v619 = vpop.f32.mrb[0].mxu0
    %v620 = vadd.f32 0.0, %v619
    %621 = vdwg.mxu0
    %v622 = vadd.f32 %v475, %v547
    %v623 = vadd.f32 %v476, %v549
    %v624 = vadd.f32 %v477, %v618
    %v625 = vadd.f32 %v478, %v620
    %v626 = vxor.u32 %v622, 2147483648
    %v627 = vmul.f32 %v626, 1.442695
    %v628 = vpow.pop %v627
    %v629 = vadd.f32 %v628, 1.0
    %v630 = vrcp.pop %v629
    %v631 = vmul.f32 1.0, %v630
    %v632 = vxor.u32 %v623, 2147483648
    %v633 = vmul.f32 %v632, 1.442695
    %v634 = vpow.pop %v633
    %v635 = vadd.f32 %v634, 1.0
    %v636 = vrcp.pop %v635
    %v637 = vmul.f32 1.0, %v636
    %v638 = vtanh.pop %v624
    %v639 = vxor.u32 %v625, 2147483648
    %v640 = vmul.f32 %v639, 1.442695
    %v641 = vpow.pop %v640
    %v642 = vadd.f32 %v641, 1.0
    %v643 = vrcp.pop %v642
    %v644 = vmul.f32 1.0, %v643
    %v645 = vld [vmem:[#allocation3] sm:$0xff]
    %v646 = vmul.f32 %v637, %v645
    %v647 = vmul.f32 %v631, %v638
    %v648 = vadd.f32 %v646, %v647
    %v649 = vtanh.pop %v648
    %v650 = vmul.f32 %v644, %v649
    %651 = vst [vmem:[#allocation3] sm:$0xff] %v648
    %652 = vst [vmem:[#allocation2] sm:$0xff] %v650
    %s653 = scalar_lea.vmem [#allocation9], 16
    %654 = vst [vmem:[%s653] sm:$0xff] %v650
    %s655 = scalar_lea.vmem [#allocation4], 96
    %v656 = vld [vmem:[%s655] sm:$0xff]
    %v657 = vld [vmem:[%s655 + $0x8] sm:$0xff]
    %v658 = vld [vmem:[%s655 + $0x10] sm:$0xff]
    %v659 = vld [vmem:[%s655 + $0x18] sm:$0xff]
    %v660 = vld [vmem:[#allocation2] sm:$0xff]
    %661 = vmatprep.subr.mxu0 %v51
    %662 = vmatpush1.msra.mxu0 %v50
    %663 = vmatprep.subr.mxu0 %v55
    %664 = vmatpush1.msra.mxu0 %v54
    %665 = vmatprep.subr.mxu0 %v59
    %666 = vmatpush1.msra.mxu0 %v58
    %667 = vmatprep.subr.mxu0 %v63
    %668 = vmatpush1.msra.mxu0 %v62
    %669 = vmatprep.subr.mxu0 %v67
    %670 = vmatpush1.msra.mxu0 %v66
    %671 = vmatprep.subr.mxu0 %v71
    %672 = vmatpush1.msra.mxu0 %v70
    %673 = vmatprep.subr.mxu0 %v75
    %674 = vmatpush1.msra.mxu0 %v74
    %675 = vmatprep.subr.mxu0 %v79
    %676 = vmatpush1.msra.mxu0 %v78
    %677 = vmatprep.subr.mxu0 %v83
    %678 = vmatpush1.msra.mxu0 %v82
    %679 = vmatprep.subr.mxu0 %v87
    %680 = vmatpush1.msra.mxu0 %v86
    %681 = vmatprep.subr.mxu0 %v91
    %682 = vmatpush1.msra.mxu0 %v90
    %683 = vmatprep.subr.mxu0 %v95
    %684 = vmatpush1.msra.mxu0 %v94
    %685 = vmatprep.subr.mxu0 %v99
    %686 = vmatpush1.msra.mxu0 %v98
    %687 = vmatprep.subr.mxu0 %v103
    %688 = vmatpush1.msra.mxu0 %v102
    %689 = vmatprep.subr.mxu0 %v107
    %690 = vmatpush1.msra.mxu0 %v106
    %691 = vmatprep.subr.mxu0 %v111
    %692 = vmatpush1.msra.mxu0 %v110
    %693 = vmatprep.subr.mxu0 0.0
    %694 = vmatpush1.msra.mxu0 0.0
    %695 = vmatprep.subr.mxu0 0.0
    %696 = vmatpush1.msra.mxu0 0.0
    %697 = vmatprep.subr.mxu0 0.0
    %698 = vmatpush1.msra.mxu0 0.0
    %699 = vmatprep.subr.mxu0 0.0
    %700 = vmatpush1.msra.mxu0 0.0
    %701 = vmatprep.subr.mxu0 0.0
    %702 = vmatpush1.msra.mxu0 0.0
    %703 = vmatprep.subr.mxu0 0.0
    %704 = vmatpush1.msra.mxu0 0.0
    %705 = vmatprep.subr.mxu0 0.0
    %706 = vmatpush1.msra.mxu0 0.0
    %707 = vmatprep.subr.mxu0 0.0
    %708 = vmatpush1.msra.mxu0 0.0
    %709 = vmatprep.subr.mxu0 0.0
    %710 = vmatpush1.msra.mxu0 0.0
    %711 = vmatprep.subr.mxu0 0.0
    %712 = vmatpush1.msra.mxu0 0.0
    %713 = vmatprep.subr.mxu0 0.0
    %714 = vmatpush1.msra.mxu0 0.0
    %715 = vmatprep.subr.mxu0 0.0
    %716 = vmatpush1.msra.mxu0 0.0
    %717 = vmatprep.subr.mxu0 0.0
    %718 = vmatpush1.msra.mxu0 0.0
    %719 = vmatprep.subr.mxu0 0.0
    %720 = vmatpush1.msra.mxu0 0.0
    %721 = vmatprep.subr.mxu0 0.0
    %722 = vmatpush1.msra.mxu0 0.0
    %723 = vmatprep.subr.mxu0 0.0
    %724 = vmatpush1.msra.mxu0 0.0
    %725 = vmatprep.mubr.f32.mxu0 0.0
    %726 = vmatmul.mubr.f32.gmra.mrb[0].mxu0 %v660
    %v727 = vpop.f32.mrb[0].mxu0
    %v728 = vadd.f32 0.0, %v727
    %v729 = vpop.f32.mrb[0].mxu0
    %v730 = vadd.f32 0.0, %v729
    %731 = vdwg.mxu0
    %732 = vmatprep.subr.mxu0 %v53
    %733 = vmatpush1.msra.mxu0 %v52
    %734 = vmatprep.subr.mxu0 %v57
    %735 = vmatpush1.msra.mxu0 %v56
    %736 = vmatprep.subr.mxu0 %v61
    %737 = vmatpush1.msra.mxu0 %v60
    %738 = vmatprep.subr.mxu0 %v65
    %739 = vmatpush1.msra.mxu0 %v64
    %740 = vmatprep.subr.mxu0 %v69
    %741 = vmatpush1.msra.mxu0 %v68
    %742 = vmatprep.subr.mxu0 %v73
    %743 = vmatpush1.msra.mxu0 %v72
    %744 = vmatprep.subr.mxu0 %v77
    %745 = vmatpush1.msra.mxu0 %v76
    %746 = vmatprep.subr.mxu0 %v81
    %747 = vmatpush1.msra.mxu0 %v80
    %748 = vmatprep.subr.mxu0 %v85
    %749 = vmatpush1.msra.mxu0 %v84
    %750 = vmatprep.subr.mxu0 %v89
    %751 = vmatpush1.msra.mxu0 %v88
    %752 = vmatprep.subr.mxu0 %v93
    %753 = vmatpush1.msra.mxu0 %v92
    %754 = vmatprep.subr.mxu0 %v97
    %755 = vmatpush1.msra.mxu0 %v96
    %756 = vmatprep.subr.mxu0 %v101
    %757 = vmatpush1.msra.mxu0 %v100
    %758 = vmatprep.subr.mxu0 %v105
    %759 = vmatpush1.msra.mxu0 %v104
    %760 = vmatprep.subr.mxu0 %v109
    %761 = vmatpush1.msra.mxu0 %v108
    %762 = vmatprep.subr.mxu0 %v113
    %763 = vmatpush1.msra.mxu0 %v112
    %764 = vmatprep.subr.mxu0 0.0
    %765 = vmatpush1.msra.mxu0 0.0
    %766 = vmatprep.subr.mxu0 0.0
    %767 = vmatpush1.msra.mxu0 0.0
    %768 = vmatprep.subr.mxu0 0.0
    %769 = vmatpush1.msra.mxu0 0.0
    %770 = vmatprep.subr.mxu0 0.0
    %771 = vmatpush1.msra.mxu0 0.0
    %772 = vmatprep.subr.mxu0 0.0
    %773 = vmatpush1.msra.mxu0 0.0
    %774 = vmatprep.subr.mxu0 0.0
    %775 = vmatpush1.msra.mxu0 0.0
    %776 = vmatprep.subr.mxu0 0.0
    %777 = vmatpush1.msra.mxu0 0.0
    %778 = vmatprep.subr.mxu0 0.0
    %779 = vmatpush1.msra.mxu0 0.0
    %780 = vmatprep.subr.mxu0 0.0
    %781 = vmatpush1.msra.mxu0 0.0
    %782 = vmatprep.subr.mxu0 0.0
    %783 = vmatpush1.msra.mxu0 0.0
    %784 = vmatprep.subr.mxu0 0.0
    %785 = vmatpush1.msra.mxu0 0.0
    %786 = vmatprep.subr.mxu0 0.0
    %787 = vmatpush1.msra.mxu0 0.0
    %788 = vmatprep.subr.mxu0 0.0
    %789 = vmatpush1.msra.mxu0 0.0
    %790 = vmatprep.subr.mxu0 0.0
    %791 = vmatpush1.msra.mxu0 0.0
    %792 = vmatprep.subr.mxu0 0.0
    %793 = vmatpush1.msra.mxu0 0.0
    %794 = vmatprep.subr.mxu0 0.0
    %795 = vmatpush1.msra.mxu0 0.0
    %796 = vmatprep.mubr.f32.mxu0 0.0
    %797 = vmatmul.mubr.f32.gmra.mrb[0].mxu0 %v660
    %v798 = vpop.f32.mrb[0].mxu0
    %v799 = vadd.f32 0.0, %v798
    %v800 = vpop.f32.mrb[0].mxu0
    %v801 = vadd.f32 0.0, %v800
    %802 = vdwg.mxu0
    %v803 = vadd.f32 %v656, %v728
    %v804 = vadd.f32 %v657, %v730
    %v805 = vadd.f32 %v658, %v799
    %v806 = vadd.f32 %v659, %v801
    %v807 = vxor.u32 %v803, 2147483648
    %v808 = vmul.f32 %v807, 1.442695
    %v809 = vpow.pop %v808
    %v810 = vadd.f32 %v809, 1.0
    %v811 = vrcp.pop %v810
    %v812 = vmul.f32 1.0, %v811
    %v813 = vxor.u32 %v804, 2147483648
    %v814 = vmul.f32 %v813, 1.442695
    %v815 = vpow.pop %v814
    %v816 = vadd.f32 %v815, 1.0
    %v817 = vrcp.pop %v816
    %v818 = vmul.f32 1.0, %v817
    %v819 = vtanh.pop %v805
    %v820 = vxor.u32 %v806, 2147483648
    %v821 = vmul.f32 %v820, 1.442695
    %v822 = vpow.pop %v821
    %v823 = vadd.f32 %v822, 1.0
    %v824 = vrcp.pop %v823
    %v825 = vmul.f32 1.0, %v824
    %v826 = vld [vmem:[#allocation3] sm:$0xff]
    %v827 = vmul.f32 %v818, %v826
    %v828 = vmul.f32 %v812, %v819
    %v829 = vadd.f32 %v827, %v828
    %v830 = vtanh.pop %v829
    %v831 = vmul.f32 %v825, %v830
    %832 = vst [vmem:[#allocation3] sm:$0xff] %v829
    %833 = vst [vmem:[#allocation2] sm:$0xff] %v831
    %s834 = scalar_lea.vmem [#allocation9], 24
    %835 = vst [vmem:[%s834] sm:$0xff] %v831
    %s836 = scalar_lea.vmem [#allocation4], 128
    %v837 = vld [vmem:[%s836] sm:$0xff]
    %v838 = vld [vmem:[%s836 + $0x8] sm:$0xff]
    %v839 = vld [vmem:[%s836 + $0x10] sm:$0xff]
    %v840 = vld [vmem:[%s836 + $0x18] sm:$0xff]
    %v841 = vld [vmem:[#allocation2] sm:$0xff]
    %842 = vmatprep.subr.mxu0 %v51
    %843 = vmatpush1.msra.mxu0 %v50
    %844 = vmatprep.subr.mxu0 %v55
    %845 = vmatpush1.msra.mxu0 %v54
    %846 = vmatprep.subr.mxu0 %v59
    %847 = vmatpush1.msra.mxu0 %v58
    %848 = vmatprep.subr.mxu0 %v63
    %849 = vmatpush1.msra.mxu0 %v62
    %850 = vmatprep.subr.mxu0 %v67
    %851 = vmatpush1.msra.mxu0 %v66
    %852 = vmatprep.subr.mxu0 %v71
    %853 = vmatpush1.msra.mxu0 %v70
    %854 = vmatprep.subr.mxu0 %v75
    %855 = vmatpush1.msra.mxu0 %v74
    %856 = vmatprep.subr.mxu0 %v79
    %857 = vmatpush1.msra.mxu0 %v78
    %858 = vmatprep.subr.mxu0 %v83
    %859 = vmatpush1.msra.mxu0 %v82
    %860 = vmatprep.subr.mxu0 %v87
    %861 = vmatpush1.msra.mxu0 %v86
    %862 = vmatprep.subr.mxu0 %v91
    %863 = vmatpush1.msra.mxu0 %v90
    %864 = vmatprep.subr.mxu0 %v95
    %865 = vmatpush1.msra.mxu0 %v94
    %866 = vmatprep.subr.mxu0 %v99
    %867 = vmatpush1.msra.mxu0 %v98
    %868 = vmatprep.subr.mxu0 %v103
    %869 = vmatpush1.msra.mxu0 %v102
    %870 = vmatprep.subr.mxu0 %v107
    %871 = vmatpush1.msra.mxu0 %v106
    %872 = vmatprep.subr.mxu0 %v111
    %873 = vmatpush1.msra.mxu0 %v110
    %874 = vmatprep.subr.mxu0 0.0
    %875 = vmatpush1.msra.mxu0 0.0
    %876 = vmatprep.subr.mxu0 0.0
    %877 = vmatpush1.msra.mxu0 0.0
    %878 = vmatprep.subr.mxu0 0.0
    %879 = vmatpush1.msra.mxu0 0.0
    %880 = vmatprep.subr.mxu0 0.0
    %881 = vmatpush1.msra.mxu0 0.0
    %882 = vmatprep.subr.mxu0 0.0
    %883 = vmatpush1.msra.mxu0 0.0
    %884 = vmatprep.subr.mxu0 0.0
    %885 = vmatpush1.msra.mxu0 0.0
    %886 = vmatprep.subr.mxu0 0.0
    %887 = vmatpush1.msra.mxu0 0.0
    %888 = vmatprep.subr.mxu0 0.0
    %889 = vmatpush1.msra.mxu0 0.0
    %890 = vmatprep.subr.mxu0 0.0
    %891 = vmatpush1.msra.mxu0 0.0
    %892 = vmatprep.subr.mxu0 0.0
    %893 = vmatpush1.msra.mxu0 0.0
    %894 = vmatprep.subr.mxu0 0.0
    %895 = vmatpush1.msra.mxu0 0.0
    %896 = vmatprep.subr.mxu0 0.0
    %897 = vmatpush1.msra.mxu0 0.0
    %898 = vmatprep.subr.mxu0 0.0
    %899 = vmatpush1.msra.mxu0 0.0
    %900 = vmatprep.subr.mxu0 0.0
    %901 = vmatpush1.msra.mxu0 0.0
    %902 = vmatprep.subr.mxu0 0.0
    %903 = vmatpush1.msra.mxu0 0.0
    %904 = vmatprep.subr.mxu0 0.0
    %905 = vmatpush1.msra.mxu0 0.0
    %906 = vmatprep.mubr.f32.mxu0 0.0
    %907 = vmatmul.mubr.f32.gmra.mrb[0].mxu0 %v841
    %v908 = vpop.f32.mrb[0].mxu0
    %v909 = vadd.f32 0.0, %v908
    %v910 = vpop.f32.mrb[0].mxu0
    %v911 = vadd.f32 0.0, %v910
    %912 = vdwg.mxu0
    %913 = vmatprep.subr.mxu0 %v53
    %914 = vmatpush1.msra.mxu0 %v52
    %915 = vmatprep.subr.mxu0 %v57
    %916 = vmatpush1.msra.mxu0 %v56
    %917 = vmatprep.subr.mxu0 %v61
    %918 = vmatpush1.msra.mxu0 %v60
    %919 = vmatprep.subr.mxu0 %v65
    %920 = vmatpush1.msra.mxu0 %v64
    %921 = vmatprep.subr.mxu0 %v69
    %922 = vmatpush1.msra.mxu0 %v68
    %923 = vmatprep.subr.mxu0 %v73
    %924 = vmatpush1.msra.mxu0 %v72
    %925 = vmatprep.subr.mxu0 %v77
    %926 = vmatpush1.msra.mxu0 %v76
    %927 = vmatprep.subr.mxu0 %v81
    %928 = vmatpush1.msra.mxu0 %v80
    %929 = vmatprep.subr.mxu0 %v85
    %930 = vmatpush1.msra.mxu0 %v84
    %931 = vmatprep.subr.mxu0 %v89
    %932 = vmatpush1.msra.mxu0 %v88
    %933 = vmatprep.subr.mxu0 %v93
    %934 = vmatpush1.msra.mxu0 %v92
    %935 = vmatprep.subr.mxu0 %v97
    %936 = vmatpush1.msra.mxu0 %v96
    %937 = vmatprep.subr.mxu0 %v101
    %938 = vmatpush1.msra.mxu0 %v100
    %939 = vmatprep.subr.mxu0 %v105
    %940 = vmatpush1.msra.mxu0 %v104
    %941 = vmatprep.subr.mxu0 %v109
    %942 = vmatpush1.msra.mxu0 %v108
    %943 = vmatprep.subr.mxu0 %v113
    %944 = vmatpush1.msra.mxu0 %v112
    %945 = vmatprep.subr.mxu0 0.0
    %946 = vmatpush1.msra.mxu0 0.0
    %947 = vmatprep.subr.mxu0 0.0
    %948 = vmatpush1.msra.mxu0 0.0
    %949 = vmatprep.subr.mxu0 0.0
    %950 = vmatpush1.msra.mxu0 0.0
    %951 = vmatprep.subr.mxu0 0.0
    %952 = vmatpush1.msra.mxu0 0.0
    %953 = vmatprep.subr.mxu0 0.0
    %954 = vmatpush1.msra.mxu0 0.0
    %955 = vmatprep.subr.mxu0 0.0
    %956 = vmatpush1.msra.mxu0 0.0
    %957 = vmatprep.subr.mxu0 0.0
    %958 = vmatpush1.msra.mxu0 0.0
    %959 = vmatprep.subr.mxu0 0.0
    %960 = vmatpush1.msra.mxu0 0.0
    %961 = vmatprep.subr.mxu0 0.0
    %962 = vmatpush1.msra.mxu0 0.0
    %963 = vmatprep.subr.mxu0 0.0
    %964 = vmatpush1.msra.mxu0 0.0
    %965 = vmatprep.subr.mxu0 0.0
    %966 = vmatpush1.msra.mxu0 0.0
    %967 = vmatprep.subr.mxu0 0.0
    %968 = vmatpush1.msra.mxu0 0.0
    %969 = vmatprep.subr.mxu0 0.0
    %970 = vmatpush1.msra.mxu0 0.0
    %971 = vmatprep.subr.mxu0 0.0
    %972 = vmatpush1.msra.mxu0 0.0
    %973 = vmatprep.subr.mxu0 0.0
    %974 = vmatpush1.msra.mxu0 0.0
    %975 = vmatprep.subr.mxu0 0.0
    %976 = vmatpush1.msra.mxu0 0.0
    %977 = vmatprep.mubr.f32.mxu0 0.0
    %978 = vmatmul.mubr.f32.gmra.mrb[0].mxu0 %v841
    %v979 = vpop.f32.mrb[0].mxu0
    %v980 = vadd.f32 0.0, %v979
    %v981 = vpop.f32.mrb[0].mxu0
    %v982 = vadd.f32 0.0, %v981
    %983 = vdwg.mxu0
    %v984 = vadd.f32 %v837, %v909
    %v985 = vadd.f32 %v838, %v911
    %v986 = vadd.f32 %v839, %v980
    %v987 = vadd.f32 %v840, %v982
    %v988 = vxor.u32 %v984, 2147483648
    %v989 = vmul.f32 %v988, 1.442695
    %v990 = vpow.pop %v989
    %v991 = vadd.f32 %v990, 1.0
    %v992 = vrcp.pop %v991
    %v993 = vmul.f32 1.0, %v992
    %v994 = vxor.u32 %v985, 2147483648
    %v995 = vmul.f32 %v994, 1.442695
    %v996 = vpow.pop %v995
    %v997 = vadd.f32 %v996, 1.0
    %v998 = vrcp.pop %v997
    %v999 = vmul.f32 1.0, %v998
    %v1000 = vtanh.pop %v986
    %v1001 = vxor.u32 %v987, 2147483648
    %v1002 = vmul.f32 %v1001, 1.442695
    %v1003 = vpow.pop %v1002
    %v1004 = vadd.f32 %v1003, 1.0
    %v1005 = vrcp.pop %v1004
    %v1006 = vmul.f32 1.0, %v1005
    %v1007 = vld [vmem:[#allocation3] sm:$0xff]
    %v1008 = vmul.f32 %v999, %v1007
    %v1009 = vmul.f32 %v993, %v1000
    %v1010 = vadd.f32 %v1008, %v1009
    %v1011 = vtanh.pop %v1010
    %v1012 = vmul.f32 %v1006, %v1011
    %1013 = vst [vmem:[#allocation3] sm:$0xff] %v1010
    %1014 = vst [vmem:[#allocation2] sm:$0xff] %v1012
    %s1015 = scalar_lea.vmem [#allocation9], 32
    %1016 = vst [vmem:[%s1015] sm:$0xff] %v1012
    %s1017 = scalar_lea.vmem [#allocation4], 160
    %v1018 = vld [vmem:[%s1017] sm:$0xff]
    %v1019 = vld [vmem:[%s1017 + $0x8] sm:$0xff]
    %v1020 = vld [vmem:[%s1017 + $0x10] sm:$0xff]
    %v1021 = vld [vmem:[%s1017 + $0x18] sm:$0xff]
    %v1022 = vld [vmem:[#allocation2] sm:$0xff]
    %1023 = vmatprep.subr.mxu0 %v51
    %1024 = vmatpush1.msra.mxu0 %v50
    %1025 = vmatprep.subr.mxu0 %v55
    %1026 = vmatpush1.msra.mxu0 %v54
    %1027 = vmatprep.subr.mxu0 %v59
    %1028 = vmatpush1.msra.mxu0 %v58
    %1029 = vmatprep.subr.mxu0 %v63
    %1030 = vmatpush1.msra.mxu0 %v62
    %1031 = vmatprep.subr.mxu0 %v67
    %1032 = vmatpush1.msra.mxu0 %v66
    %1033 = vmatprep.subr.mxu0 %v71
    %1034 = vmatpush1.msra.mxu0 %v70
    %1035 = vmatprep.subr.mxu0 %v75
    %1036 = vmatpush1.msra.mxu0 %v74
    %1037 = vmatprep.subr.mxu0 %v79
    %1038 = vmatpush1.msra.mxu0 %v78
    %1039 = vmatprep.subr.mxu0 %v83
    %1040 = vmatpush1.msra.mxu0 %v82
    %1041 = vmatprep.subr.mxu0 %v87
    %1042 = vmatpush1.msra.mxu0 %v86
    %1043 = vmatprep.subr.mxu0 %v91
    %1044 = vmatpush1.msra.mxu0 %v90
    %1045 = vmatprep.subr.mxu0 %v95
    %1046 = vmatpush1.msra.mxu0 %v94
    %1047 = vmatprep.subr.mxu0 %v99
    %1048 = vmatpush1.msra.mxu0 %v98
    %1049 = vmatprep.subr.mxu0 %v103
    %1050 = vmatpush1.msra.mxu0 %v102
    %1051 = vmatprep.subr.mxu0 %v107
    %1052 = vmatpush1.msra.mxu0 %v106
    %1053 = vmatprep.subr.mxu0 %v111
    %1054 = vmatpush1.msra.mxu0 %v110
    %1055 = vmatprep.subr.mxu0 0.0
    %1056 = vmatpush1.msra.mxu0 0.0
    %1057 = vmatprep.subr.mxu0 0.0
    %1058 = vmatpush1.msra.mxu0 0.0
    %1059 = vmatprep.subr.mxu0 0.0
    %1060 = vmatpush1.msra.mxu0 0.0
    %1061 = vmatprep.subr.mxu0 0.0
    %1062 = vmatpush1.msra.mxu0 0.0
    %1063 = vmatprep.subr.mxu0 0.0
    %1064 = vmatpush1.msra.mxu0 0.0
    %1065 = vmatprep.subr.mxu0 0.0
    %1066 = vmatpush1.msra.mxu0 0.0
    %1067 = vmatprep.subr.mxu0 0.0
    %1068 = vmatpush1.msra.mxu0 0.0
    %1069 = vmatprep.subr.mxu0 0.0
    %1070 = vmatpush1.msra.mxu0 0.0
    %1071 = vmatprep.subr.mxu0 0.0
    %1072 = vmatpush1.msra.mxu0 0.0
    %1073 = vmatprep.subr.mxu0 0.0
    %1074 = vmatpush1.msra.mxu0 0.0
    %1075 = vmatprep.subr.mxu0 0.0
    %1076 = vmatpush1.msra.mxu0 0.0
    %1077 = vmatprep.subr.mxu0 0.0
    %1078 = vmatpush1.msra.mxu0 0.0
    %1079 = vmatprep.subr.mxu0 0.0
    %1080 = vmatpush1.msra.mxu0 0.0
    %1081 = vmatprep.subr.mxu0 0.0
    %1082 = vmatpush1.msra.mxu0 0.0
    %1083 = vmatprep.subr.mxu0 0.0
    %1084 = vmatpush1.msra.mxu0 0.0
    %1085 = vmatprep.subr.mxu0 0.0
    %1086 = vmatpush1.msra.mxu0 0.0
    %1087 = vmatprep.mubr.f32.mxu0 0.0
    %1088 = vmatmul.mubr.f32.gmra.mrb[0].mxu0 %v1022
    %v1089 = vpop.f32.mrb[0].mxu0
    %v1090 = vadd.f32 0.0, %v1089
    %v1091 = vpop.f32.mrb[0].mxu0
    %v1092 = vadd.f32 0.0, %v1091
    %1093 = vdwg.mxu0
    %1094 = vmatprep.subr.mxu0 %v53
    %1095 = vmatpush1.msra.mxu0 %v52
    %1096 = vmatprep.subr.mxu0 %v57
    %1097 = vmatpush1.msra.mxu0 %v56
    %1098 = vmatprep.subr.mxu0 %v61
    %1099 = vmatpush1.msra.mxu0 %v60
    %1100 = vmatprep.subr.mxu0 %v65
    %1101 = vmatpush1.msra.mxu0 %v64
    %1102 = vmatprep.subr.mxu0 %v69
    %1103 = vmatpush1.msra.mxu0 %v68
    %1104 = vmatprep.subr.mxu0 %v73
    %1105 = vmatpush1.msra.mxu0 %v72
    %1106 = vmatprep.subr.mxu0 %v77
    %1107 = vmatpush1.msra.mxu0 %v76
    %1108 = vmatprep.subr.mxu0 %v81
    %1109 = vmatpush1.msra.mxu0 %v80
    %1110 = vmatprep.subr.mxu0 %v85
    %1111 = vmatpush1.msra.mxu0 %v84
    %1112 = vmatprep.subr.mxu0 %v89
    %1113 = vmatpush1.msra.mxu0 %v88
    %1114 = vmatprep.subr.mxu0 %v93
    %1115 = vmatpush1.msra.mxu0 %v92
    %1116 = vmatprep.subr.mxu0 %v97
    %1117 = vmatpush1.msra.mxu0 %v96
    %1118 = vmatprep.subr.mxu0 %v101
    %1119 = vmatpush1.msra.mxu0 %v100
    %1120 = vmatprep.subr.mxu0 %v105
    %1121 = vmatpush1.msra.mxu0 %v104
    %1122 = vmatprep.subr.mxu0 %v109
    %1123 = vmatpush1.msra.mxu0 %v108
    %1124 = vmatprep.subr.mxu0 %v113
    %1125 = vmatpush1.msra.mxu0 %v112
    %1126 = vmatprep.subr.mxu0 0.0
    %1127 = vmatpush1.msra.mxu0 0.0
    %1128 = vmatprep.subr.mxu0 0.0
    %1129 = vmatpush1.msra.mxu0 0.0
    %1130 = vmatprep.subr.mxu0 0.0
    %1131 = vmatpush1.msra.mxu0 0.0
    %1132 = vmatprep.subr.mxu0 0.0
    %1133 = vmatpush1.msra.mxu0 0.0
    %1134 = vmatprep.subr.mxu0 0.0
    %1135 = vmatpush1.msra.mxu0 0.0
    %1136 = vmatprep.subr.mxu0 0.0
    %1137 = vmatpush1.msra.mxu0 0.0
    %1138 = vmatprep.subr.mxu0 0.0
    %1139 = vmatpush1.msra.mxu0 0.0
    %1140 = vmatprep.subr.mxu0 0.0
    %1141 = vmatpush1.msra.mxu0 0.0
    %1142 = vmatprep.subr.mxu0 0.0
    %1143 = vmatpush1.msra.mxu0 0.0
    %1144 = vmatprep.subr.mxu0 0.0
    %1145 = vmatpush1.msra.mxu0 0.0
    %1146 = vmatprep.subr.mxu0 0.0
    %1147 = vmatpush1.msra.mxu0 0.0
    %1148 = vmatprep.subr.mxu0 0.0
    %1149 = vmatpush1.msra.mxu0 0.0
    %1150 = vmatprep.subr.mxu0 0.0
    %1151 = vmatpush1.msra.mxu0 0.0
    %1152 = vmatprep.subr.mxu0 0.0
    %1153 = vmatpush1.msra.mxu0 0.0
    %1154 = vmatprep.subr.mxu0 0.0
    %1155 = vmatpush1.msra.mxu0 0.0
    %1156 = vmatprep.subr.mxu0 0.0
    %1157 = vmatpush1.msra.mxu0 0.0
    %1158 = vmatprep.mubr.f32.mxu0 0.0
    %1159 = vmatmul.mubr.f32.gmra.mrb[0].mxu0 %v1022
    %v1160 = vpop.f32.mrb[0].mxu0
    %v1161 = vadd.f32 0.0, %v1160
    %v1162 = vpop.f32.mrb[0].mxu0
    %v1163 = vadd.f32 0.0, %v1162
    %1164 = vdwg.mxu0
    %v1165 = vadd.f32 %v1018, %v1090
    %v1166 = vadd.f32 %v1019, %v1092
    %v1167 = vadd.f32 %v1020, %v1161
    %v1168 = vadd.f32 %v1021, %v1163
    %v1169 = vxor.u32 %v1165, 2147483648
    %v1170 = vmul.f32 %v1169, 1.442695
    %v1171 = vpow.pop %v1170
    %v1172 = vadd.f32 %v1171, 1.0
    %v1173 = vrcp.pop %v1172
    %v1174 = vmul.f32 1.0, %v1173
    %v1175 = vxor.u32 %v1166, 2147483648
    %v1176 = vmul.f32 %v1175, 1.442695
    %v1177 = vpow.pop %v1176
    %v1178 = vadd.f32 %v1177, 1.0
    %v1179 = vrcp.pop %v1178
    %v1180 = vmul.f32 1.0, %v1179
    %v1181 = vtanh.pop %v1167
    %v1182 = vxor.u32 %v1168, 2147483648
    %v1183 = vmul.f32 %v1182, 1.442695
    %v1184 = vpow.pop %v1183
    %v1185 = vadd.f32 %v1184, 1.0
    %v1186 = vrcp.pop %v1185
    %v1187 = vmul.f32 1.0, %v1186
    %v1188 = vld [vmem:[#allocation3] sm:$0xff]
    %v1189 = vmul.f32 %v1180, %v1188
    %v1190 = vmul.f32 %v1174, %v1181
    %v1191 = vadd.f32 %v1189, %v1190
    %v1192 = vtanh.pop %v1191
    %v1193 = vmul.f32 %v1187, %v1192
    %1194 = vst [vmem:[#allocation3] sm:$0xff] %v1191
    %1195 = vst [vmem:[#allocation2] sm:$0xff] %v1193
    %s1196 = scalar_lea.vmem [#allocation9], 40
    %1197 = vst [vmem:[%s1196] sm:$0xff] %v1193
    %s1198 = scalar_lea.vmem [#allocation4], 192
    %v1199 = vld [vmem:[%s1198] sm:$0xff]
    %v1200 = vld [vmem:[%s1198 + $0x8] sm:$0xff]
    %v1201 = vld [vmem:[%s1198 + $0x10] sm:$0xff]
    %v1202 = vld [vmem:[%s1198 + $0x18] sm:$0xff]
    %v1203 = vld [vmem:[#allocation2] sm:$0xff]
    %1204 = vmatprep.subr.mxu0 %v51
    %1205 = vmatpush1.msra.mxu0 %v50
    %1206 = vmatprep.subr.mxu0 %v55
    %1207 = vmatpush1.msra.mxu0 %v54
    %1208 = vmatprep.subr.mxu0 %v59
    %1209 = vmatpush1.msra.mxu0 %v58
    %1210 = vmatprep.subr.mxu0 %v63
    %1211 = vmatpush1.msra.mxu0 %v62
    %1212 = vmatprep.subr.mxu0 %v67
    %1213 = vmatpush1.msra.mxu0 %v66
    %1214 = vmatprep.subr.mxu0 %v71
    %1215 = vmatpush1.msra.mxu0 %v70
    %1216 = vmatprep.subr.mxu0 %v75
    %1217 = vmatpush1.msra.mxu0 %v74
    %1218 = vmatprep.subr.mxu0 %v79
    %1219 = vmatpush1.msra.mxu0 %v78
    %1220 = vmatprep.subr.mxu0 %v83
    %1221 = vmatpush1.msra.mxu0 %v82
    %1222 = vmatprep.subr.mxu0 %v87
    %1223 = vmatpush1.msra.mxu0 %v86
    %1224 = vmatprep.subr.mxu0 %v91
    %1225 = vmatpush1.msra.mxu0 %v90
    %1226 = vmatprep.subr.mxu0 %v95
    %1227 = vmatpush1.msra.mxu0 %v94
    %1228 = vmatprep.subr.mxu0 %v99
    %1229 = vmatpush1.msra.mxu0 %v98
    %1230 = vmatprep.subr.mxu0 %v103
    %1231 = vmatpush1.msra.mxu0 %v102
    %1232 = vmatprep.subr.mxu0 %v107
    %1233 = vmatpush1.msra.mxu0 %v106
    %1234 = vmatprep.subr.mxu0 %v111
    %1235 = vmatpush1.msra.mxu0 %v110
    %1236 = vmatprep.subr.mxu0 0.0
    %1237 = vmatpush1.msra.mxu0 0.0
    %1238 = vmatprep.subr.mxu0 0.0
    %1239 = vmatpush1.msra.mxu0 0.0
    %1240 = vmatprep.subr.mxu0 0.0
    %1241 = vmatpush1.msra.mxu0 0.0
    %1242 = vmatprep.subr.mxu0 0.0
    %1243 = vmatpush1.msra.mxu0 0.0
    %1244 = vmatprep.subr.mxu0 0.0
    %1245 = vmatpush1.msra.mxu0 0.0
    %1246 = vmatprep.subr.mxu0 0.0
    %1247 = vmatpush1.msra.mxu0 0.0
    %1248 = vmatprep.subr.mxu0 0.0
    %1249 = vmatpush1.msra.mxu0 0.0
    %1250 = vmatprep.subr.mxu0 0.0
    %1251 = vmatpush1.msra.mxu0 0.0
    %1252 = vmatprep.subr.mxu0 0.0
    %1253 = vmatpush1.msra.mxu0 0.0
    %1254 = vmatprep.subr.mxu0 0.0
    %1255 = vmatpush1.msra.mxu0 0.0
    %1256 = vmatprep.subr.mxu0 0.0
    %1257 = vmatpush1.msra.mxu0 0.0
    %1258 = vmatprep.subr.mxu0 0.0
    %1259 = vmatpush1.msra.mxu0 0.0
    %1260 = vmatprep.subr.mxu0 0.0
    %1261 = vmatpush1.msra.mxu0 0.0
    %1262 = vmatprep.subr.mxu0 0.0
    %1263 = vmatpush1.msra.mxu0 0.0
    %1264 = vmatprep.subr.mxu0 0.0
    %1265 = vmatpush1.msra.mxu0 0.0
    %1266 = vmatprep.subr.mxu0 0.0
    %1267 = vmatpush1.msra.mxu0 0.0
    %1268 = vmatprep.mubr.f32.mxu0 0.0
    %1269 = vmatmul.mubr.f32.gmra.mrb[0].mxu0 %v1203
    %v1270 = vpop.f32.mrb[0].mxu0
    %v1271 = vadd.f32 0.0, %v1270
    %v1272 = vpop.f32.mrb[0].mxu0
    %v1273 = vadd.f32 0.0, %v1272
    %1274 = vdwg.mxu0
    %1275 = vmatprep.subr.mxu0 %v53
    %1276 = vmatpush1.msra.mxu0 %v52
    %1277 = vmatprep.subr.mxu0 %v57
    %1278 = vmatpush1.msra.mxu0 %v56
    %1279 = vmatprep.subr.mxu0 %v61
    %1280 = vmatpush1.msra.mxu0 %v60
    %1281 = vmatprep.subr.mxu0 %v65
    %1282 = vmatpush1.msra.mxu0 %v64
    %1283 = vmatprep.subr.mxu0 %v69
    %1284 = vmatpush1.msra.mxu0 %v68
    %1285 = vmatprep.subr.mxu0 %v73
    %1286 = vmatpush1.msra.mxu0 %v72
    %1287 = vmatprep.subr.mxu0 %v77
    %1288 = vmatpush1.msra.mxu0 %v76
    %1289 = vmatprep.subr.mxu0 %v81
    %1290 = vmatpush1.msra.mxu0 %v80
    %1291 = vmatprep.subr.mxu0 %v85
    %1292 = vmatpush1.msra.mxu0 %v84
    %1293 = vmatprep.subr.mxu0 %v89
    %1294 = vmatpush1.msra.mxu0 %v88
    %1295 = vmatprep.subr.mxu0 %v93
    %1296 = vmatpush1.msra.mxu0 %v92
    %1297 = vmatprep.subr.mxu0 %v97
    %1298 = vmatpush1.msra.mxu0 %v96
    %1299 = vmatprep.subr.mxu0 %v101
    %1300 = vmatpush1.msra.mxu0 %v100
    %1301 = vmatprep.subr.mxu0 %v105
    %1302 = vmatpush1.msra.mxu0 %v104
    %1303 = vmatprep.subr.mxu0 %v109
    %1304 = vmatpush1.msra.mxu0 %v108
    %1305 = vmatprep.subr.mxu0 %v113
    %1306 = vmatpush1.msra.mxu0 %v112
    %1307 = vmatprep.subr.mxu0 0.0
    %1308 = vmatpush1.msra.mxu0 0.0
    %1309 = vmatprep.subr.mxu0 0.0
    %1310 = vmatpush1.msra.mxu0 0.0
    %1311 = vmatprep.subr.mxu0 0.0
    %1312 = vmatpush1.msra.mxu0 0.0
    %1313 = vmatprep.subr.mxu0 0.0
    %1314 = vmatpush1.msra.mxu0 0.0
    %1315 = vmatprep.subr.mxu0 0.0
    %1316 = vmatpush1.msra.mxu0 0.0
    %1317 = vmatprep.subr.mxu0 0.0
    %1318 = vmatpush1.msra.mxu0 0.0
    %1319 = vmatprep.subr.mxu0 0.0
    %1320 = vmatpush1.msra.mxu0 0.0
    %1321 = vmatprep.subr.mxu0 0.0
    %1322 = vmatpush1.msra.mxu0 0.0
    %1323 = vmatprep.subr.mxu0 0.0
    %1324 = vmatpush1.msra.mxu0 0.0
    %1325 = vmatprep.subr.mxu0 0.0
    %1326 = vmatpush1.msra.mxu0 0.0
    %1327 = vmatprep.subr.mxu0 0.0
    %1328 = vmatpush1.msra.mxu0 0.0
    %1329 = vmatprep.subr.mxu0 0.0
    %1330 = vmatpush1.msra.mxu0 0.0
    %1331 = vmatprep.subr.mxu0 0.0
    %1332 = vmatpush1.msra.mxu0 0.0
    %1333 = vmatprep.subr.mxu0 0.0
    %1334 = vmatpush1.msra.mxu0 0.0
    %1335 = vmatprep.subr.mxu0 0.0
    %1336 = vmatpush1.msra.mxu0 0.0
    %1337 = vmatprep.subr.mxu0 0.0
    %1338 = vmatpush1.msra.mxu0 0.0
    %1339 = vmatprep.mubr.f32.mxu0 0.0
    %1340 = vmatmul.mubr.f32.gmra.mrb[0].mxu0 %v1203
    %v1341 = vpop.f32.mrb[0].mxu0
    %v1342 = vadd.f32 0.0, %v1341
    %v1343 = vpop.f32.mrb[0].mxu0
    %v1344 = vadd.f32 0.0, %v1343
    %1345 = vdwg.mxu0
    %v1346 = vadd.f32 %v1199, %v1271
    %v1347 = vadd.f32 %v1200, %v1273
    %v1348 = vadd.f32 %v1201, %v1342
    %v1349 = vadd.f32 %v1202, %v1344
    %v1350 = vxor.u32 %v1346, 2147483648
    %v1351 = vmul.f32 %v1350, 1.442695
    %v1352 = vpow.pop %v1351
    %v1353 = vadd.f32 %v1352, 1.0
    %v1354 = vrcp.pop %v1353
    %v1355 = vmul.f32 1.0, %v1354
    %v1356 = vxor.u32 %v1347, 2147483648
    %v1357 = vmul.f32 %v1356, 1.442695
    %v1358 = vpow.pop %v1357
    %v1359 = vadd.f32 %v1358, 1.0
    %v1360 = vrcp.pop %v1359
    %v1361 = vmul.f32 1.0, %v1360
    %v1362 = vtanh.pop %v1348
    %v1363 = vxor.u32 %v1349, 2147483648
    %v1364 = vmul.f32 %v1363, 1.442695
    %v1365 = vpow.pop %v1364
    %v1366 = vadd.f32 %v1365, 1.0
    %v1367 = vrcp.pop %v1366
    %v1368 = vmul.f32 1.0, %v1367
    %v1369 = vld [vmem:[#allocation3] sm:$0xff]
    %v1370 = vmul.f32 %v1361, %v1369
    %v1371 = vmul.f32 %v1355, %v1362
    %v1372 = vadd.f32 %v1370, %v1371
    %v1373 = vtanh.pop %v1372
    %v1374 = vmul.f32 %v1368, %v1373
    %1375 = vst [vmem:[#allocation3] sm:$0xff] %v1372
    %1376 = vst [vmem:[#allocation2] sm:$0xff] %v1374
    %s1377 = scalar_lea.vmem [#allocation9], 48
    %1378 = vst [vmem:[%s1377] sm:$0xff] %v1374
    %s1379 = scalar_lea.vmem [#allocation4], 224
    %v1380 = vld [vmem:[%s1379] sm:$0xff]
    %v1381 = vld [vmem:[%s1379 + $0x8] sm:$0xff]
    %v1382 = vld [vmem:[%s1379 + $0x10] sm:$0xff]
    %v1383 = vld [vmem:[%s1379 + $0x18] sm:$0xff]
    %v1384 = vld [vmem:[#allocation2] sm:$0xff]
    %1385 = vmatprep.subr.mxu0 %v51
    %1386 = vmatpush1.msra.mxu0 %v50
    %1387 = vmatprep.subr.mxu0 %v55
    %1388 = vmatpush1.msra.mxu0 %v54
    %1389 = vmatprep.subr.mxu0 %v59
    %1390 = vmatpush1.msra.mxu0 %v58
    %1391 = vmatprep.subr.mxu0 %v63
    %1392 = vmatpush1.msra.mxu0 %v62
    %1393 = vmatprep.subr.mxu0 %v67
    %1394 = vmatpush1.msra.mxu0 %v66
    %1395 = vmatprep.subr.mxu0 %v71
    %1396 = vmatpush1.msra.mxu0 %v70
    %1397 = vmatprep.subr.mxu0 %v75
    %1398 = vmatpush1.msra.mxu0 %v74
    %1399 = vmatprep.subr.mxu0 %v79
    %1400 = vmatpush1.msra.mxu0 %v78
    %1401 = vmatprep.subr.mxu0 %v83
    %1402 = vmatpush1.msra.mxu0 %v82
    %1403 = vmatprep.subr.mxu0 %v87
    %1404 = vmatpush1.msra.mxu0 %v86
    %1405 = vmatprep.subr.mxu0 %v91
    %1406 = vmatpush1.msra.mxu0 %v90
    %1407 = vmatprep.subr.mxu0 %v95
    %1408 = vmatpush1.msra.mxu0 %v94
    %1409 = vmatprep.subr.mxu0 %v99
    %1410 = vmatpush1.msra.mxu0 %v98
    %1411 = vmatprep.subr.mxu0 %v103
    %1412 = vmatpush1.msra.mxu0 %v102
    %1413 = vmatprep.subr.mxu0 %v107
    %1414 = vmatpush1.msra.mxu0 %v106
    %1415 = vmatprep.subr.mxu0 %v111
    %1416 = vmatpush1.msra.mxu0 %v110
    %1417 = vmatprep.subr.mxu0 0.0
    %1418 = vmatpush1.msra.mxu0 0.0
    %1419 = vmatprep.subr.mxu0 0.0
    %1420 = vmatpush1.msra.mxu0 0.0
    %1421 = vmatprep.subr.mxu0 0.0
    %1422 = vmatpush1.msra.mxu0 0.0
    %1423 = vmatprep.subr.mxu0 0.0
    %1424 = vmatpush1.msra.mxu0 0.0
    %1425 = vmatprep.subr.mxu0 0.0
    %1426 = vmatpush1.msra.mxu0 0.0
    %1427 = vmatprep.subr.mxu0 0.0
    %1428 = vmatpush1.msra.mxu0 0.0
    %1429 = vmatprep.subr.mxu0 0.0
    %1430 = vmatpush1.msra.mxu0 0.0
    %1431 = vmatprep.subr.mxu0 0.0
    %1432 = vmatpush1.msra.mxu0 0.0
    %1433 = vmatprep.subr.mxu0 0.0
    %1434 = vmatpush1.msra.mxu0 0.0
    %1435 = vmatprep.subr.mxu0 0.0
    %1436 = vmatpush1.msra.mxu0 0.0
    %1437 = vmatprep.subr.mxu0 0.0
    %1438 = vmatpush1.msra.mxu0 0.0
    %1439 = vmatprep.subr.mxu0 0.0
    %1440 = vmatpush1.msra.mxu0 0.0
    %1441 = vmatprep.subr.mxu0 0.0
    %1442 = vmatpush1.msra.mxu0 0.0
    %1443 = vmatprep.subr.mxu0 0.0
    %1444 = vmatpush1.msra.mxu0 0.0
    %1445 = vmatprep.subr.mxu0 0.0
    %1446 = vmatpush1.msra.mxu0 0.0
    %1447 = vmatprep.subr.mxu0 0.0
    %1448 = vmatpush1.msra.mxu0 0.0
    %1449 = vmatprep.mubr.f32.mxu0 0.0
    %1450 = vmatmul.mubr.f32.gmra.mrb[0].mxu0 %v1384
    %v1451 = vpop.f32.mrb[0].mxu0
    %v1452 = vadd.f32 0.0, %v1451
    %v1453 = vpop.f32.mrb[0].mxu0
    %v1454 = vadd.f32 0.0, %v1453
    %1455 = vdwg.mxu0
    %1456 = vmatprep.subr.mxu0 %v53
    %1457 = vmatpush1.msra.mxu0 %v52
    %1458 = vmatprep.subr.mxu0 %v57
    %1459 = vmatpush1.msra.mxu0 %v56
    %1460 = vmatprep.subr.mxu0 %v61
    %1461 = vmatpush1.msra.mxu0 %v60
    %1462 = vmatprep.subr.mxu0 %v65
    %1463 = vmatpush1.msra.mxu0 %v64
    %1464 = vmatprep.subr.mxu0 %v69
    %1465 = vmatpush1.msra.mxu0 %v68
    %1466 = vmatprep.subr.mxu0 %v73
    %1467 = vmatpush1.msra.mxu0 %v72
    %1468 = vmatprep.subr.mxu0 %v77
    %1469 = vmatpush1.msra.mxu0 %v76
    %1470 = vmatprep.subr.mxu0 %v81
    %1471 = vmatpush1.msra.mxu0 %v80
    %1472 = vmatprep.subr.mxu0 %v85
    %1473 = vmatpush1.msra.mxu0 %v84
    %1474 = vmatprep.subr.mxu0 %v89
    %1475 = vmatpush1.msra.mxu0 %v88
    %1476 = vmatprep.subr.mxu0 %v93
    %1477 = vmatpush1.msra.mxu0 %v92
    %1478 = vmatprep.subr.mxu0 %v97
    %1479 = vmatpush1.msra.mxu0 %v96
    %1480 = vmatprep.subr.mxu0 %v101
    %1481 = vmatpush1.msra.mxu0 %v100
    %1482 = vmatprep.subr.mxu0 %v105
    %1483 = vmatpush1.msra.mxu0 %v104
    %1484 = vmatprep.subr.mxu0 %v109
    %1485 = vmatpush1.msra.mxu0 %v108
    %1486 = vmatprep.subr.mxu0 %v113
    %1487 = vmatpush1.msra.mxu0 %v112
    %1488 = vmatprep.subr.mxu0 0.0
    %1489 = vmatpush1.msra.mxu0 0.0
    %1490 = vmatprep.subr.mxu0 0.0
    %1491 = vmatpush1.msra.mxu0 0.0
    %1492 = vmatprep.subr.mxu0 0.0
    %1493 = vmatpush1.msra.mxu0 0.0
    %1494 = vmatprep.subr.mxu0 0.0
    %1495 = vmatpush1.msra.mxu0 0.0
    %1496 = vmatprep.subr.mxu0 0.0
    %1497 = vmatpush1.msra.mxu0 0.0
    %1498 = vmatprep.subr.mxu0 0.0
    %1499 = vmatpush1.msra.mxu0 0.0
    %1500 = vmatprep.subr.mxu0 0.0
    %1501 = vmatpush1.msra.mxu0 0.0
    %1502 = vmatprep.subr.mxu0 0.0
    %1503 = vmatpush1.msra.mxu0 0.0
    %1504 = vmatprep.subr.mxu0 0.0
    %1505 = vmatpush1.msra.mxu0 0.0
    %1506 = vmatprep.subr.mxu0 0.0
    %1507 = vmatpush1.msra.mxu0 0.0
    %1508 = vmatprep.subr.mxu0 0.0
    %1509 = vmatpush1.msra.mxu0 0.0
    %1510 = vmatprep.subr.mxu0 0.0
    %1511 = vmatpush1.msra.mxu0 0.0
    %1512 = vmatprep.subr.mxu0 0.0
    %1513 = vmatpush1.msra.mxu0 0.0
    %1514 = vmatprep.subr.mxu0 0.0
    %1515 = vmatpush1.msra.mxu0 0.0
    %1516 = vmatprep.subr.mxu0 0.0
    %1517 = vmatpush1.msra.mxu0 0.0
    %1518 = vmatprep.subr.mxu0 0.0
    %1519 = vmatpush1.msra.mxu0 0.0
    %1520 = vmatprep.mubr.f32.mxu0 0.0
    %1521 = vmatmul.mubr.f32.gmra.mrb[0].mxu0 %v1384
    %v1522 = vpop.f32.mrb[0].mxu0
    %v1523 = vadd.f32 0.0, %v1522
    %v1524 = vpop.f32.mrb[0].mxu0
    %v1525 = vadd.f32 0.0, %v1524
    %1526 = vdwg.mxu0
    %v1527 = vadd.f32 %v1380, %v1452
    %v1528 = vadd.f32 %v1381, %v1454
    %v1529 = vadd.f32 %v1382, %v1523
    %v1530 = vadd.f32 %v1383, %v1525
    %v1531 = vxor.u32 %v1527, 2147483648
    %v1532 = vmul.f32 %v1531, 1.442695
    %v1533 = vpow.pop %v1532
    %v1534 = vadd.f32 %v1533, 1.0
    %v1535 = vrcp.pop %v1534
    %v1536 = vmul.f32 1.0, %v1535
    %v1537 = vxor.u32 %v1528, 2147483648
    %v1538 = vmul.f32 %v1537, 1.442695
    %v1539 = vpow.pop %v1538
    %v1540 = vadd.f32 %v1539, 1.0
    %v1541 = vrcp.pop %v1540
    %v1542 = vmul.f32 1.0, %v1541
    %v1543 = vtanh.pop %v1529
    %v1544 = vxor.u32 %v1530, 2147483648
    %v1545 = vmul.f32 %v1544, 1.442695
    %v1546 = vpow.pop %v1545
    %v1547 = vadd.f32 %v1546, 1.0
    %v1548 = vrcp.pop %v1547
    %v1549 = vmul.f32 1.0, %v1548
    %v1550 = vld [vmem:[#allocation3] sm:$0xff]
    %v1551 = vmul.f32 %v1542, %v1550
    %v1552 = vmul.f32 %v1536, %v1543
    %v1553 = vadd.f32 %v1551, %v1552
    %v1554 = vtanh.pop %v1553
    %v1555 = vmul.f32 %v1549, %v1554
    %1556 = vst [vmem:[#allocation3] sm:$0xff] %v1553
    %1557 = vst [vmem:[#allocation2] sm:$0xff] %v1555
    %s1558 = scalar_lea.vmem [#allocation9], 56
    %1559 = vst [vmem:[%s1558] sm:$0xff] %v1555
    // Predicated region
    $region22: #{tpu_custom_call.1} parent=1 // pred_check
      %p1560 = pneg %p44
    $region23: #{tpu_custom_call.1} parent=1 // pred_check_branch
      %1562 = sbr.rel (%p1560) target = $region25
    $region24: #{tpu_custom_call.1} parent=1 // pred_region
      %v1563 = vld [vmem:[#allocation2] sm:$0xff]
      %1564 = vst [vmem:[#allocation10] sm:$0xff] %v1563
      %v1565 = vld [vmem:[#allocation3] sm:$0xff]
      %1566 = vst [vmem:[#allocation12] sm:$0xff] %v1565
    $region25: #{tpu_custom_call.1} parent=1 // pred_fallthru
      _
    // Predicated region
    $region26: #{tpu_custom_call.1} parent=1 // pred_check
      _
    $region27: #{tpu_custom_call.1} parent=1 // pred_check_branch
      %1568 = sbr.rel (0) target = $region29
    $region28: #{tpu_custom_call.1} parent=1 // pred_region
      %s1570 = ssub.s32 1024, 1024
      %1571 = vsyncadd [#allocation6], %s1570
      %s1572 = sshll.u32 [#allocation9], 4
      %s1573 = int_to_ptr.vmem [resolvable:$true] %s1572
      %1578 = dma.vmem_to_hbm [thread:$0]  %s1573, 1024, %s2, [#allocation6], 128, 128, 8
    $region29: #{tpu_custom_call.1} parent=1 // pred_fallthru
      _
    // Predicated region
    $region30: #{tpu_custom_call.1} parent=1 // pred_check
      _
    $region31: #{tpu_custom_call.1} parent=1 // pred_check_branch
      %1580 = sbr.rel (0) target = $region33
    $region32: #{tpu_custom_call.1} parent=1 // pred_region
      %s1582 = ssub.s32 128, 128
      %1583 = vsyncadd [#allocation11], %s1582
      %s1585 = sshll.u32 [#allocation10], 4
      %s1586 = int_to_ptr.vmem [resolvable:$true] %s1585
      %1588 = dma.vmem_to_hbm [thread:$0]  %s1586, 128, %s3, [#allocation11]
    $region33: #{tpu_custom_call.1} parent=1 // pred_fallthru
      _
    // Predicated region
    $region34: #{tpu_custom_call.1} parent=1 // pred_check
      _
    $region35: #{tpu_custom_call.1} parent=1 // pred_check_branch
      %1590 = sbr.rel (0) target = $region37
    $region36: #{tpu_custom_call.1} parent=1 // pred_region
      %s1592 = ssub.s32 128, 128
      %1593 = vsyncadd [#allocation11], %s1592
      %s1595 = sshll.u32 [#allocation12], 4
      %s1596 = int_to_ptr.vmem [resolvable:$true] %s1595
      %1598 = dma.vmem_to_hbm [thread:$0]  %s1596, 128, %s4, [#allocation11]
    $region37: #{tpu_custom_call.1} parent=1 // pred_fallthru
      _
    // Predicated region
    $region38: #{tpu_custom_call.1} parent=1 // pred_check
      _
    $region39: #{tpu_custom_call.1} parent=1 // pred_check_branch
      %1600 = sbr.rel (0) target = $region41
    $region40: #{tpu_custom_call.1} parent=1 // pred_region
      %1601 = dma.done [#allocation6], 1024
    $region41: #{tpu_custom_call.1} parent=1 // pred_fallthru
      _
    // Predicated region
    $region42: #{tpu_custom_call.1} parent=1 // pred_check
      _
    $region43: #{tpu_custom_call.1} parent=1 // pred_check_branch
      %1603 = sbr.rel (0) target = $region45
    $region44: #{tpu_custom_call.1} parent=1 // pred_region
      %1604 = dma.done [#allocation11], 128
    $region45: #{tpu_custom_call.1} parent=1 // pred_fallthru
      _
    // Predicated region
    $region46: #{tpu_custom_call.1} parent=1 // pred_check
      _
    $region47: #{tpu_custom_call.1} parent=1 // pred_check_branch
      %1606 = sbr.rel (0) target = $region49
    $region48: #{tpu_custom_call.1} parent=1 // pred_region
      %1607 = dma.done [#allocation11], 128
    $region49: #{tpu_custom_call.1} parent=1 // pred_fallthru
      _
    %1608 = vsyncpa [#allocation5], 1
    %1609 = vsyncpa [#allocation8], 1
    %1610 = vsyncpa [#allocation6], 1
    %1611 = vsyncpa [#allocation11], 1

</llo_original>
